<compile_context>
chip_gen: v5e
topology: v5e:2x2
jax: 0.10.0
libtpu: 0.0.40
codegen_flags: <defaults>
</compile_context>

<pallas_src>
import math

import jax
import jax.numpy as jnp
import numpy as np
from jax.experimental import pallas as pl
from jax.experimental.pallas import tpu as pltpu

# ----- synthetic config (small) -----
BS = 2
NUM_WORD = 8
NUM_SENT = 3
NUM_VALID = 16
D_MODEL = 32
NUM_HEAD = 4
D_K = D_MODEL // NUM_HEAD
D_FF = 2 * D_MODEL
SV = NUM_SENT * NUM_VALID
LN_EPS = 1e-5
NEG_INF = -1e30          # used by the pure-JAX reference (where-style masking)
MASK_BIAS = -1e9         # additive mask bias used inside the kernel
OUT_LANES = 128          # lane-dense packed output width

# ---- packed matmul-weight slab: w_mat (N_MAT, D_MODEL), lane-dense ----
QS = 0 * D_MODEL          # self-attn Q weight (1/sqrt(d_k) folded)
KS = 1 * D_MODEL          # self-attn K
VS = 2 * D_MODEL          # self-attn V
OS = 3 * D_MODEL          # self-attn out-proj
CQ = 4 * D_MODEL          # cross-attn Q (1/sqrt(d_k) folded)
CK = 5 * D_MODEL          # cross-attn K
CV = 6 * D_MODEL          # cross-attn V
G1 = 7 * D_MODEL          # gate W1: (2*D, D)
F1T = G1 + 2 * D_MODEL    # FF W1 stored transposed: (D_FF, D)
F2 = F1T + D_FF           # FF W2: (D_FF, D)
FOLD = F2 + D_FF          # (S*V, D) fold matrix (first V cols), sums sentence groups
N_MAT = FOLD + SV

# ---- packed aux slab: aux (N_AUX, 64), lane-dense ----
AUX_LANES = 64
LN_G = 0                  # rows 0..5  LN gamma (res1, cross.text, cross.av, cross.out,
LN_B = 6                  # rows 6..11 LN beta    gate-norm, res2)
BQ, BK, BV, BO = 12, 13, 14, 15      # self-attn biases (Q scaled)
BCQ, BCK, BCV = 16, 17, 18           # cross-attn biases (Q scaled)
BG1, BF2, BF1 = 19, 20, 21           # gate b1, FF b2, FF b1 (full 64-lane row)
HM = 22                              # rows 22..25 per-head lane masks (H, D)
BGW2 = 26                            # gate W2 row vector
N_AUX = 27


def make_kernel(gate_b2: float):
    D, H, dk = D_MODEL, NUM_HEAD, D_K
    W, S, V = NUM_WORD, NUM_SENT, NUM_VALID
    BW = BS * W
    BSV = BS * S * V

    def nt(a, b_mat):
        # a: (M, K), b_mat: (N, K)  ->  a @ b_mat.T : (M, N)   (MXU-native "NT" form)
        return jax.lax.dot_general(a, b_mat, (((1,), (1,)), ((), ())),
                                   preferred_element_type=jnp.float32)

    def kernel(text_ref, av_ref, maskb_ref, sel_ref, wm_ref, aux_ref, o_ref):
        aux = aux_ref[...]                                  # (N_AUX, 64), resident

        def ln(y, i):
            mu = jnp.mean(y, axis=-1, keepdims=True)
            var = jnp.mean(jnp.square(y - mu), axis=-1, keepdims=True)
            return ((y - mu) * jax.lax.rsqrt(var + LN_EPS)
                    * aux[LN_G + i, :D] + aux[LN_B + i, :D])

        def proj(x, woff, boff):
            return jnp.dot(x, wm_ref[woff:woff + D],
                           preferred_element_type=jnp.float32) + aux[boff, :D]

        # per-head lane selector, shape (1, H, 1, D): 1.0 on head h's d_k lanes
        hm4 = aux[HM:HM + H, :D].reshape(1, H, 1, D)

        x = text_ref[...].reshape(BW, D)                    # (BS*W, D)

        # ---- 1) masked multi-head self-attention + residual (res1) ----
        xn = ln(x, 0)
        q = proj(xn, QS, BQ)                                # (BW, D), 1/sqrt(dk) folded
        k = proj(xn, KS, BK)
        v = proj(xn, VS, BV)
        # head-expanded query: row (h, w) keeps only head h's lanes
        q_exp = (q.reshape(BS, 1, W, D) * hm4).reshape(BS, H * W, D)
        s = jnp.einsum('bnd,bkd->bnk', q_exp, k.reshape(BS, W, D),
                       preferred_element_type=jnp.float32)  # (BS, H*W, W)
        s4 = s.reshape(BS, H, W, W) + maskb_ref[...].reshape(BS, 1, W, W)
        m = jnp.max(s4, axis=-1, keepdims=True)
        e = jnp.exp(s4 - m)
        p = e / jnp.sum(e, axis=-1, keepdims=True)          # (BS, H, W, W)
        ctx_exp = jnp.einsum('bnk,bkd->bnd', p.reshape(BS, H * W, W),
                             v.reshape(BS, W, D),
                             preferred_element_type=jnp.float32)
        ctx = (ctx_exp.reshape(BS, H, W, D) * hm4).sum(axis=1).reshape(BW, D)
        text1 = x + proj(ctx, OS, BO)                       # single out-proj matmul

        # ---- 2) cross attention: flattened (S*V) keys + 0/1 sentence selector ----
        t1n = ln(text1, 1)
        avn = ln(av_ref[...].reshape(BSV, D), 2)            # (BS*S*V, D)
        cq = proj(t1n, CQ, BCQ)                             # (BW, D), scale folded
        ck = proj(avn, CK, BCK).reshape(BS, SV, D)
        cv = proj(avn, CV, BCV).reshape(BS, SV, D)
        cq_exp = (cq.reshape(BS, 1, W, D) * hm4).reshape(BS, H * W, D)
        logit = jnp.einsum('bnd,bkd->bnk', cq_exp, ck,
                           preferred_element_type=jnp.float32)   # (BS, H*W, S*V)
        a = jax.nn.sigmoid(logit).reshape(BS, H, W, SV)
        a_m = a * sel_ref[...].reshape(BS, 1, W, SV)        # zero non-selected sents
        cctx_exp = jnp.einsum('bnk,bkd->bnd', a_m.reshape(BS, H * W, SV), cv,
                              preferred_element_type=jnp.float32)
        cctx = (cctx_exp.reshape(BS, H, W, D) * hm4).sum(axis=1).reshape(BW, D)
        res = ln(cctx, 3)
        # head-mean attention, folded over the S sentence groups via tiny matmul
        a_mean = (jnp.sum(a_m, axis=1) * (1.0 / H)).reshape(BW, SV)
        attn_full = jnp.dot(a_mean, wm_ref[FOLD:FOLD + SV],
                            preferred_element_type=jnp.float32)  # (BW, D), cols<V valid

        # ---- 3) memory gate (single merged matmul) + gated residual norm ----
        xg = jnp.concatenate([text1, res], axis=-1)          # (BW, 2D)
        h1 = jnp.maximum(
            jnp.dot(xg, wm_ref[G1:G1 + 2 * D],
                    preferred_element_type=jnp.float32) + aux[BG1, :D], 0.0)
        ratio = jax.nn.sigmoid(
            jnp.sum(h1 * aux[BGW2, :D], axis=-1, keepdims=True) + gate_b2)  # (BW, 1)
        text2 = ln((1.0 - ratio) * text1 + ratio * res, 4)

        # ---- 4) position-wise feed-forward + residual (res2) ----
        n2 = ln(text2, 5)
        hf = jnp.maximum(nt(n2, wm_ref[F1T:F1T + D_FF]) + aux[BF1, :D_FF], 0.0)
        ffo = jnp.dot(hf, wm_ref[F2:F2 + D_FF],
                      preferred_element_type=jnp.float32) + aux[BF2, :D]
        out = text2 + ffo

        # ---- 5) single lane-dense packed output (128 lanes, unmasked stores) ----
        out3 = out.reshape(BS, W, D)
        attn3 = attn_full.reshape(BS, W, D)                 # lanes [0, V) valid
        ratio3 = ratio.reshape(BS, W, 1)
        pad = jnp.broadcast_to(ratio3, (BS, W, OUT_LANES - 2 * D))
        o_ref[...] = jnp.concatenate([out3, attn3, pad], axis=-1)

    return kernel


def pack_params(p):
    D, H, dk = D_MODEL, NUM_HEAD, D_K
    S, V = NUM_SENT, NUM_VALID
    inv_scale = 1.0 / math.sqrt(dk)
    w = np.asarray(p["w_proj"])
    b = np.asarray(p["b_proj"])

    w_mat = np.zeros((N_MAT, D), np.float32)
    w_mat[QS:QS + D] = w[0] * inv_scale     # self Q (scale folded)
    w_mat[KS:KS + D] = w[1]
    w_mat[VS:VS + D] = w[2]
    w_mat[OS:OS + D] = w[3]
    w_mat[CQ:CQ + D] = w[4] * inv_scale     # cross Q (scale folded)
    w_mat[CK:CK + D] = w[5]
    w_mat[CV:CV + D] = w[6]
    w_mat[G1:G1 + 2 * D] = np.asarray(p["gate_w1"])
    w_mat[F1T:F1T + D_FF] = np.asarray(p["ff_w1"]).T
    w_mat[F2:F2 + D_FF] = np.asarray(p["ff_w2"])
    for s in range(S):                      # sentence-group fold matrix
        for v_ in range(V):
            w_mat[FOLD + s * V + v_, v_] = 1.0

    aux = np.zeros((N_AUX, AUX_LANES), np.float32)
    aux[LN_G:LN_G + 6, :D] = np.asarray(p["ln_g"])
    aux[LN_B:LN_B + 6, :D] = np.asarray(p["ln_b"])
    aux[BQ, :D] = b[0] * inv_scale
    aux[BK, :D] = b[1]
    aux[BV, :D] = b[2]
    aux[BO, :D] = b[3]
    aux[BCQ, :D] = b[4] * inv_scale
    aux[BCK, :D] = b[5]
    aux[BCV, :D] = b[6]
    aux[BG1, :D] = np.asarray(p["gate_b1"])[0]
    aux[BF2, :D] = np.asarray(p["ff_b2"])[0]
    aux[BF1, :D_FF] = np.asarray(p["ff_b1"])[0]
    aux[BGW2, :D] = np.asarray(p["gate_w2"])[0]
    for h in range(H):                      # per-head lane masks
        aux[HM + h, h * dk:(h + 1) * dk] = 1.0

    return jnp.asarray(w_mat), jnp.asarray(aux), float(p["gate_b2"])


def cross_decoder_layer(text, av_feat, text_mask, attn_sent_index, params):
    bs, W, D = text.shape
    _, S, V, _ = av_feat.shape
    sv = S * V
    w_mat, aux, gate_b2 = pack_params(params)

    # wrapper-side glue: additive mask bias and a (bs, W, S*V) 0/1 sentence selector
    mask_bias = jnp.where(text_mask > 0, 0.0, MASK_BIAS).astype(jnp.float32)
    oh = jax.nn.one_hot(attn_sent_index, S, dtype=jnp.float32)          # (bs, W, S)
    sel = jnp.broadcast_to(oh[..., None], (bs, W, S, V)).reshape(bs, W, sv)

    kernel = make_kernel(gate_b2)
    slab = pl.pallas_call(
        kernel,
        grid=(1,),
        in_specs=[
            pl.BlockSpec((bs, W, D), lambda i: (0, 0, 0)),          # text (whole batch)
            pl.BlockSpec((bs, S, V, D), lambda i: (0, 0, 0, 0)),    # av_feat
            pl.BlockSpec((bs, W, W), lambda i: (0, 0, 0)),          # additive mask bias
            pl.BlockSpec((bs, W, sv), lambda i: (0, 0, 0)),         # sentence selector
            pl.BlockSpec(w_mat.shape, lambda i: (0, 0)),            # packed matmul slab
            pl.BlockSpec(aux.shape, lambda i: (0, 0)),              # packed LN / biases
        ],
        out_specs=pl.BlockSpec((bs, W, OUT_LANES), lambda i: (0, 0, 0)),
        out_shape=jax.ShapeDtypeStruct((bs, W, OUT_LANES), jnp.float32),
        compiler_params=pltpu.CompilerParams(dimension_semantics=("arbitrary",)),
    )(text, av_feat, mask_bias, sel, w_mat, aux)

    out_text = slab[..., :D]
    attn = slab[..., D:D + V]
    ratio = slab[..., 2 * D:2 * D + 1]
    return out_text, attn, ratio


def init_params(key):
    D = D_MODEL
    keys = jax.random.split(key, 11)

    def nrm(k, shape, s=0.08):
        return (s * jax.random.normal(k, shape)).astype(jnp.float32)

    return dict(
        w_proj=nrm(keys[0], (7, D, D)),
        b_proj=nrm(keys[1], (7, D)),
        ln_g=(1.0 + nrm(keys[2], (6, D))).astype(jnp.float32),
        ln_b=nrm(keys[3], (6, D)),
        ff_w1=nrm(keys[4], (D, D_FF)),
        ff_b1=nrm(keys[5], (1, D_FF)),
        ff_w2=nrm(keys[6], (D_FF, D)),
        ff_b2=nrm(keys[7], (1, D)),
        gate_w1=nrm(keys[8], (2 * D, D)),
        gate_b1=nrm(keys[9], (1, D)),
        gate_w2=nrm(keys[10], (1, D)),
        gate_b2=0.05,        # scalar bias of the final gate Linear(d_model, 1)
    )


def ref_forward(text, av_feat, text_mask, attn_sent_index, params):
    """Pure-JAX mirror of the PyTorch forward (eval mode), for validation."""
    D, H, dk = D_MODEL, NUM_HEAD, D_K
    scale = math.sqrt(dk)
    w, b = params["w_proj"], params["b_proj"]
    lg, lb = params["ln_g"], params["ln_b"]

    def ln(y, i):
        mu = y.mean(-1, keepdims=True)
        var = jnp.square(y - mu).mean(-1, keepdims=True)
        return (y - mu) * jax.lax.rsqrt(var + LN_EPS) * lg[i] + lb[i]

    bs, W, _ = text.shape
    _, S, V, _ = av_feat.shape
    mask = text_mask.astype(jnp.float32)

    # res1: text + MHA(norm(text))
    xn = ln(text, 0)
    q = xn @ w[0] + b[0]
    k = xn @ w[1] + b[1]
    v = xn @ w[2] + b[2]
    qh = q.reshape(bs, W, H, dk).transpose(0, 2, 1, 3)
    kh = k.reshape(bs, W, H, dk).transpose(0, 2, 1, 3)
    vh = v.reshape(bs, W, H, dk).transpose(0, 2, 1, 3)
    s = qh @ kh.transpose(0, 1, 3, 2) / scale
    s = jnp.where(mask[:, None] > 0, s, NEG_INF)
    p = jax.nn.softmax(s, axis=-1)
    ctx = (p @ vh).transpose(0, 2, 1, 3).reshape(bs, W, D)
    text1 = text + (ctx @ w[3] + b[3])

    # cross attention
    t1n = ln(text1, 1)
    avn = ln(av_feat, 2)
    cq = (t1n @ w[4] + b[4]).reshape(bs, W, 1, H, dk)
    ck = (avn @ w[5] + b[5]).reshape(bs, S, V, H, dk)
    cv = (avn @ w[6] + b[6]).reshape(bs, S, V, H, dk)
    bidx = jnp.arange(bs)[:, None]
    ck = ck[bidx, attn_sent_index]      # (bs, W, V, H, dk)
    cv = cv[bidx, attn_sent_index]
    logits = (cq * ck).sum(-1, keepdims=True) / scale
    a = jax.nn.sigmoid(logits)                            # (bs, W, V, H, 1)
    out = (a * cv).sum(axis=-3).reshape(bs, W, D)
    res = ln(out, 3)
    attn_mean = a.mean(-2).squeeze(-1)                    # (bs, W, V)

    # memory gate
    xg = jnp.concatenate([text1, res], axis=-1)
    h1 = jax.nn.relu(xg @ params["gate_w1"] + params["gate_b1"][0])
    ratio = jax.nn.sigmoid((h1 * params["gate_w2"][0]).sum(-1, keepdims=True)
                           + params["gate_b2"])
    text2 = ln((1.0 - ratio) * text1 + ratio * res, 4)

    # res2: text2 + FF(norm(text2))
    n2 = ln(text2, 5)
    ffo = jax.nn.relu(n2 @ params["ff_w1"] + params["ff_b1"][0]) @ params["ff_w2"] \
        + params["ff_b2"][0]
    return text2 + ffo, attn_mean, ratio


if __name__ == "__main__":
    key = jax.random.PRNGKey(0)
    kp, kt, ka, ki = jax.random.split(key, 4)
    params = init_params(kp)

    text = jax.random.normal(kt, (BS, NUM_WORD, D_MODEL), jnp.float32)
    av_feat = jax.random.normal(ka, (BS, NUM_SENT, NUM_VALID, D_MODEL), jnp.float32)
    attn_sent_index = jax.random.randint(ki, (BS, NUM_WORD), 0, NUM_SENT)
    # causal text mask (1 = attend, 0 = masked)
    causal = jnp.tril(jnp.ones((NUM_WORD, NUM_WORD), jnp.float32))
    text_mask = jnp.broadcast_to(causal, (BS, NUM_WORD, NUM_WORD))

    out_text, attn, ratio = cross_decoder_layer(text, av_feat, text_mask,
                                                attn_sent_index, params)
    jax.block_until_ready((out_text, attn, ratio))

    ref_text, ref_attn, ref_ratio = ref_forward(text, av_feat, text_mask,
                                                attn_sent_index, params)
    np.testing.assert_allclose(np.asarray(out_text), np.asarray(ref_text),
                               atol=2e-4, rtol=2e-4)
    np.testing.assert_allclose(np.asarray(attn), np.asarray(ref_attn),
                               atol=2e-4, rtol=2e-4)
    np.testing.assert_allclose(np.asarray(ratio), np.asarray(ref_ratio),
                               atol=2e-4, rtol=2e-4)
    print("KERNEL_OK")
</pallas_src>

<mosaic_0001>
module attributes {stable_mosaic.version = 11 : i64} {
  func.func @kernel(%arg0: i32, %arg1: memref<2x8x32xf32, #tpu.memory_space<vmem>>, %arg2: memref<2x3x16x32xf32, #tpu.memory_space<vmem>>, %arg3: memref<2x8x8xf32, #tpu.memory_space<vmem>>, %arg4: memref<2x8x48xf32, #tpu.memory_space<vmem>>, %arg5: memref<464x32xf32, #tpu.memory_space<vmem>>, %arg6: memref<27x64xf32, #tpu.memory_space<vmem>>, %arg7: memref<2x8x128xf32, #tpu.memory_space<vmem>>) attributes {dimension_semantics = [#tpu.dimension_semantics<arbitrary>], iteration_bounds = array<i64: 1>, scalar_prefetch = 0 : i64, scratch_operands = 0 : i64, tpu.core_type = #tpu.core_type<tc>, window_params = [{pipeline_mode = #tpu.pipeline_mode<synchronous>, transform_indices = @transform_0, window_bounds = array<i64: 2, 8, 32>}, {pipeline_mode = #tpu.pipeline_mode<synchronous>, transform_indices = @transform_1, window_bounds = array<i64: 2, 3, 16, 32>}, {pipeline_mode = #tpu.pipeline_mode<synchronous>, transform_indices = @transform_2, window_bounds = array<i64: 2, 8, 8>}, {pipeline_mode = #tpu.pipeline_mode<synchronous>, transform_indices = @transform_3, window_bounds = array<i64: 2, 8, 48>}, {pipeline_mode = #tpu.pipeline_mode<synchronous>, transform_indices = @transform_4, window_bounds = array<i64: 464, 32>}, {pipeline_mode = #tpu.pipeline_mode<synchronous>, transform_indices = @transform_5, window_bounds = array<i64: 27, 64>}, {pipeline_mode = #tpu.pipeline_mode<synchronous>, transform_indices = @transform_6, window_bounds = array<i64: 2, 8, 128>}]} {
    %c0 = arith.constant 0 : index
    %c0_0 = arith.constant 0 : index
    %0 = vector.load %arg6[%c0, %c0_0] : memref<27x64xf32, #tpu.memory_space<vmem>>, vector<27x64xf32>
    %1 = vector.extract_strided_slice %0 {offsets = [22, 0], sizes = [4, 32], strides = [1, 1]} : vector<27x64xf32> to vector<4x32xf32>
    %2 = vector.shape_cast %1 : vector<4x32xf32> to vector<1x4x1x32xf32>
    %c0_1 = arith.constant 0 : index
    %c0_2 = arith.constant 0 : index
    %c0_3 = arith.constant 0 : index
    %3 = vector.load %arg1[%c0_1, %c0_2, %c0_3] : memref<2x8x32xf32, #tpu.memory_space<vmem>>, vector<2x8x32xf32>
    %4 = vector.shape_cast %3 : vector<2x8x32xf32> to vector<16x32xf32>
    %cst = arith.constant dense<0.000000e+00> : vector<16xf32>
    %5 = vector.multi_reduction <add>, %4, %cst [1] : vector<16x32xf32> to vector<16xf32>
    %6 = vector.shape_cast %5 : vector<16xf32> to vector<16x1xf32>
    %cst_4 = arith.constant 3.200000e+01 : f32
    %7 = vector.broadcast %cst_4 : f32 to vector<16x1xf32>
    %8 = arith.divf %6, %7 : vector<16x1xf32>
    %9 = vector.broadcast %8 : vector<16x1xf32> to vector<16x32xf32>
    %10 = arith.subf %4, %9 : vector<16x32xf32>
    %11 = arith.mulf %10, %10 : vector<16x32xf32>
    %cst_5 = arith.constant dense<0.000000e+00> : vector<16xf32>
    %12 = vector.multi_reduction <add>, %11, %cst_5 [1] : vector<16x32xf32> to vector<16xf32>
    %13 = vector.shape_cast %12 : vector<16xf32> to vector<16x1xf32>
    %cst_6 = arith.constant 3.200000e+01 : f32
    %14 = vector.broadcast %cst_6 : f32 to vector<16x1xf32>
    %15 = arith.divf %13, %14 : vector<16x1xf32>
    %16 = vector.broadcast %8 : vector<16x1xf32> to vector<16x32xf32>
    %17 = arith.subf %4, %16 : vector<16x32xf32>
    %cst_7 = arith.constant 9.99999974E-6 : f32
    %18 = vector.broadcast %cst_7 : f32 to vector<16x1xf32>
    %19 = arith.addf %15, %18 : vector<16x1xf32>
    %20 = math.rsqrt %19 : vector<16x1xf32>
    %21 = vector.broadcast %20 : vector<16x1xf32> to vector<16x32xf32>
    %22 = arith.mulf %17, %21 : vector<16x32xf32>
    %23 = vector.extract_strided_slice %0 {offsets = [0, 0], sizes = [1, 32], strides = [1, 1]} : vector<27x64xf32> to vector<1x32xf32>
    %24 = vector.shape_cast %23 : vector<1x32xf32> to vector<32xf32>
    %25 = vector.shape_cast %24 : vector<32xf32> to vector<1x32xf32>
    %26 = vector.broadcast %25 : vector<1x32xf32> to vector<16x32xf32>
    %27 = arith.mulf %22, %26 : vector<16x32xf32>
    %28 = vector.extract_strided_slice %0 {offsets = [6, 0], sizes = [1, 32], strides = [1, 1]} : vector<27x64xf32> to vector<1x32xf32>
    %29 = vector.shape_cast %28 : vector<1x32xf32> to vector<32xf32>
    %30 = vector.shape_cast %29 : vector<32xf32> to vector<1x32xf32>
    %31 = vector.broadcast %30 : vector<1x32xf32> to vector<16x32xf32>
    %32 = arith.addf %27, %31 : vector<16x32xf32>
    %c0_8 = arith.constant 0 : index
    %c0_9 = arith.constant 0 : index
    %33 = vector.load %arg5[%c0_8, %c0_9] : memref<464x32xf32, #tpu.memory_space<vmem>>, vector<32x32xf32>
    %cst_10 = arith.constant dense<0.000000e+00> : vector<16x32xf32>
    %34 = tpu.matmul %32, %33, %cst_10 {dimension_numbers = #tpu.dot_dimension_numbers<[1], [0], [0], [1], [0, 0, 1, 1], [], []>} : vector<16x32xf32>, vector<32x32xf32>, vector<16x32xf32> -> vector<16x32xf32>
    %35 = vector.extract_strided_slice %0 {offsets = [12, 0], sizes = [1, 32], strides = [1, 1]} : vector<27x64xf32> to vector<1x32xf32>
    %36 = vector.shape_cast %35 : vector<1x32xf32> to vector<32xf32>
    %37 = vector.shape_cast %36 : vector<32xf32> to vector<1x32xf32>
    %38 = vector.broadcast %37 : vector<1x32xf32> to vector<16x32xf32>
    %39 = arith.addf %34, %38 : vector<16x32xf32>
    %c32 = arith.constant 32 : index
    %c0_11 = arith.constant 0 : index
    %40 = vector.load %arg5[%c32, %c0_11] : memref<464x32xf32, #tpu.memory_space<vmem>>, vector<32x32xf32>
    %cst_12 = arith.constant dense<0.000000e+00> : vector<16x32xf32>
    %41 = tpu.matmul %32, %40, %cst_12 {dimension_numbers = #tpu.dot_dimension_numbers<[1], [0], [0], [1], [0, 0, 1, 1], [], []>} : vector<16x32xf32>, vector<32x32xf32>, vector<16x32xf32> -> vector<16x32xf32>
    %42 = vector.extract_strided_slice %0 {offsets = [13, 0], sizes = [1, 32], strides = [1, 1]} : vector<27x64xf32> to vector<1x32xf32>
    %43 = vector.shape_cast %42 : vector<1x32xf32> to vector<32xf32>
    %44 = vector.shape_cast %43 : vector<32xf32> to vector<1x32xf32>
    %45 = vector.broadcast %44 : vector<1x32xf32> to vector<16x32xf32>
    %46 = arith.addf %41, %45 : vector<16x32xf32>
    %c64 = arith.constant 64 : index
    %c0_13 = arith.constant 0 : index
    %47 = vector.load %arg5[%c64, %c0_13] : memref<464x32xf32, #tpu.memory_space<vmem>>, vector<32x32xf32>
    %cst_14 = arith.constant dense<0.000000e+00> : vector<16x32xf32>
    %48 = tpu.matmul %32, %47, %cst_14 {dimension_numbers = #tpu.dot_dimension_numbers<[1], [0], [0], [1], [0, 0, 1, 1], [], []>} : vector<16x32xf32>, vector<32x32xf32>, vector<16x32xf32> -> vector<16x32xf32>
    %49 = vector.extract_strided_slice %0 {offsets = [14, 0], sizes = [1, 32], strides = [1, 1]} : vector<27x64xf32> to vector<1x32xf32>
    %50 = vector.shape_cast %49 : vector<1x32xf32> to vector<32xf32>
    %51 = vector.shape_cast %50 : vector<32xf32> to vector<1x32xf32>
    %52 = vector.broadcast %51 : vector<1x32xf32> to vector<16x32xf32>
    %53 = arith.addf %48, %52 : vector<16x32xf32>
    %54 = vector.shape_cast %39 : vector<16x32xf32> to vector<2x1x8x32xf32>
    %55 = vector.broadcast %54 : vector<2x1x8x32xf32> to vector<2x4x8x32xf32>
    %56 = vector.broadcast %2 : vector<1x4x1x32xf32> to vector<2x4x8x32xf32>
    %57 = arith.mulf %55, %56 : vector<2x4x8x32xf32>
    %58 = vector.shape_cast %57 : vector<2x4x8x32xf32> to vector<2x32x32xf32>
    %59 = vector.shape_cast %46 : vector<16x32xf32> to vector<2x8x32xf32>
    "tpu.trace_start"() <{level = 10 : i32, message = "bnd,bkd->bnk"}> : () -> ()
    %cst_15 = arith.constant dense<0.000000e+00> : vector<2x32x8xf32>
    %60 = tpu.matmul %58, %59, %cst_15 {dimension_numbers = #tpu.dot_dimension_numbers<[2], [2], [1], [1], [0, 0, 0, 1, 1, 1], [0], [0]>} : vector<2x32x32xf32>, vector<2x8x32xf32>, vector<2x32x8xf32> -> vector<2x32x8xf32>
    "tpu.trace_stop"() : () -> ()
    %61 = vector.shape_cast %60 : vector<2x32x8xf32> to vector<2x4x8x8xf32>
    %c0_16 = arith.constant 0 : index
    %c0_17 = arith.constant 0 : index
    %c0_18 = arith.constant 0 : index
    %62 = vector.load %arg3[%c0_16, %c0_17, %c0_18] : memref<2x8x8xf32, #tpu.memory_space<vmem>>, vector<2x8x8xf32>
    %63 = vector.shape_cast %62 : vector<2x8x8xf32> to vector<2x1x8x8xf32>
    %64 = vector.broadcast %63 : vector<2x1x8x8xf32> to vector<2x4x8x8xf32>
    %65 = arith.addf %61, %64 : vector<2x4x8x8xf32>
    %cst_19 = arith.constant dense<0xFF800000> : vector<2x4x8xf32>
    %66 = vector.multi_reduction <maximumf>, %65, %cst_19 [3] : vector<2x4x8x8xf32> to vector<2x4x8xf32>
    %67 = vector.shape_cast %66 : vector<2x4x8xf32> to vector<2x4x8x1xf32>
    %68 = vector.broadcast %67 : vector<2x4x8x1xf32> to vector<2x4x8x8xf32>
    %69 = arith.subf %65, %68 : vector<2x4x8x8xf32>
    %70 = math.exp %69 : vector<2x4x8x8xf32>
    %cst_20 = arith.constant dense<0.000000e+00> : vector<2x4x8xf32>
    %71 = vector.multi_reduction <add>, %70, %cst_20 [3] : vector<2x4x8x8xf32> to vector<2x4x8xf32>
    %72 = vector.shape_cast %71 : vector<2x4x8xf32> to vector<2x4x8x1xf32>
    %73 = vector.broadcast %72 : vector<2x4x8x1xf32> to vector<2x4x8x8xf32>
    %74 = arith.divf %70, %73 : vector<2x4x8x8xf32>
    %75 = vector.shape_cast %74 : vector<2x4x8x8xf32> to vector<2x32x8xf32>
    %76 = vector.shape_cast %53 : vector<16x32xf32> to vector<2x8x32xf32>
    "tpu.trace_start"() <{level = 10 : i32, message = "bnk,bkd->bnd"}> : () -> ()
    %cst_21 = arith.constant dense<0.000000e+00> : vector<2x32x32xf32>
    %77 = tpu.matmul %75, %76, %cst_21 {dimension_numbers = #tpu.dot_dimension_numbers<[2], [1], [1], [2], [0, 0, 0, 1, 1, 2], [0], [0]>} : vector<2x32x8xf32>, vector<2x8x32xf32>, vector<2x32x32xf32> -> vector<2x32x32xf32>
    "tpu.trace_stop"() : () -> ()
    %78 = vector.shape_cast %77 : vector<2x32x32xf32> to vector<2x4x8x32xf32>
    %79 = vector.broadcast %2 : vector<1x4x1x32xf32> to vector<2x4x8x32xf32>
    %80 = arith.mulf %78, %79 : vector<2x4x8x32xf32>
    %cst_22 = arith.constant dense<0.000000e+00> : vector<2x8x32xf32>
    %81 = vector.multi_reduction <add>, %80, %cst_22 [1] : vector<2x4x8x32xf32> to vector<2x8x32xf32>
    %82 = vector.shape_cast %81 : vector<2x8x32xf32> to vector<16x32xf32>
    %c96 = arith.constant 96 : index
    %c0_23 = arith.constant 0 : index
    %83 = vector.load %arg5[%c96, %c0_23] : memref<464x32xf32, #tpu.memory_space<vmem>>, vector<32x32xf32>
    %cst_24 = arith.constant dense<0.000000e+00> : vector<16x32xf32>
    %84 = tpu.matmul %82, %83, %cst_24 {dimension_numbers = #tpu.dot_dimension_numbers<[1], [0], [0], [1], [0, 0, 1, 1], [], []>} : vector<16x32xf32>, vector<32x32xf32>, vector<16x32xf32> -> vector<16x32xf32>
    %85 = vector.extract_strided_slice %0 {offsets = [15, 0], sizes = [1, 32], strides = [1, 1]} : vector<27x64xf32> to vector<1x32xf32>
    %86 = vector.shape_cast %85 : vector<1x32xf32> to vector<32xf32>
    %87 = vector.shape_cast %86 : vector<32xf32> to vector<1x32xf32>
    %88 = vector.broadcast %87 : vector<1x32xf32> to vector<16x32xf32>
    %89 = arith.addf %84, %88 : vector<16x32xf32>
    %90 = arith.addf %4, %89 : vector<16x32xf32>
    %cst_25 = arith.constant dense<0.000000e+00> : vector<16xf32>
    %91 = vector.multi_reduction <add>, %90, %cst_25 [1] : vector<16x32xf32> to vector<16xf32>
    %92 = vector.shape_cast %91 : vector<16xf32> to vector<16x1xf32>
    %cst_26 = arith.constant 3.200000e+01 : f32
    %93 = vector.broadcast %cst_26 : f32 to vector<16x1xf32>
    %94 = arith.divf %92, %93 : vector<16x1xf32>
    %95 = vector.broadcast %94 : vector<16x1xf32> to vector<16x32xf32>
    %96 = arith.subf %90, %95 : vector<16x32xf32>
    %97 = arith.mulf %96, %96 : vector<16x32xf32>
    %cst_27 = arith.constant dense<0.000000e+00> : vector<16xf32>
    %98 = vector.multi_reduction <add>, %97, %cst_27 [1] : vector<16x32xf32> to vector<16xf32>
    %99 = vector.shape_cast %98 : vector<16xf32> to vector<16x1xf32>
    %cst_28 = arith.constant 3.200000e+01 : f32
    %100 = vector.broadcast %cst_28 : f32 to vector<16x1xf32>
    %101 = arith.divf %99, %100 : vector<16x1xf32>
    %102 = vector.broadcast %94 : vector<16x1xf32> to vector<16x32xf32>
    %103 = arith.subf %90, %102 : vector<16x32xf32>
    %cst_29 = arith.constant 9.99999974E-6 : f32
    %104 = vector.broadcast %cst_29 : f32 to vector<16x1xf32>
    %105 = arith.addf %101, %104 : vector<16x1xf32>
    %106 = math.rsqrt %105 : vector<16x1xf32>
    %107 = vector.broadcast %106 : vector<16x1xf32> to vector<16x32xf32>
    %108 = arith.mulf %103, %107 : vector<16x32xf32>
    %109 = vector.extract_strided_slice %0 {offsets = [1, 0], sizes = [1, 32], strides = [1, 1]} : vector<27x64xf32> to vector<1x32xf32>
    %110 = vector.shape_cast %109 : vector<1x32xf32> to vector<32xf32>
    %111 = vector.shape_cast %110 : vector<32xf32> to vector<1x32xf32>
    %112 = vector.broadcast %111 : vector<1x32xf32> to vector<16x32xf32>
    %113 = arith.mulf %108, %112 : vector<16x32xf32>
    %114 = vector.extract_strided_slice %0 {offsets = [7, 0], sizes = [1, 32], strides = [1, 1]} : vector<27x64xf32> to vector<1x32xf32>
    %115 = vector.shape_cast %114 : vector<1x32xf32> to vector<32xf32>
    %116 = vector.shape_cast %115 : vector<32xf32> to vector<1x32xf32>
    %117 = vector.broadcast %116 : vector<1x32xf32> to vector<16x32xf32>
    %118 = arith.addf %113, %117 : vector<16x32xf32>
    %c0_30 = arith.constant 0 : index
    %c0_31 = arith.constant 0 : index
    %c0_32 = arith.constant 0 : index
    %c0_33 = arith.constant 0 : index
    %119 = vector.load %arg2[%c0_30, %c0_31, %c0_32, %c0_33] : memref<2x3x16x32xf32, #tpu.memory_space<vmem>>, vector<2x3x16x32xf32>
    %120 = vector.shape_cast %119 : vector<2x3x16x32xf32> to vector<96x32xf32>
    %cst_34 = arith.constant dense<0.000000e+00> : vector<96xf32>
    %121 = vector.multi_reduction <add>, %120, %cst_34 [1] : vector<96x32xf32> to vector<96xf32>
    %122 = vector.shape_cast %121 : vector<96xf32> to vector<96x1xf32>
    %cst_35 = arith.constant 3.200000e+01 : f32
    %123 = vector.broadcast %cst_35 : f32 to vector<96x1xf32>
    %124 = arith.divf %122, %123 : vector<96x1xf32>
    %125 = vector.broadcast %124 : vector<96x1xf32> to vector<96x32xf32>
    %126 = arith.subf %120, %125 : vector<96x32xf32>
    %127 = arith.mulf %126, %126 : vector<96x32xf32>
    %cst_36 = arith.constant dense<0.000000e+00> : vector<96xf32>
    %128 = vector.multi_reduction <add>, %127, %cst_36 [1] : vector<96x32xf32> to vector<96xf32>
    %129 = vector.shape_cast %128 : vector<96xf32> to vector<96x1xf32>
    %cst_37 = arith.constant 3.200000e+01 : f32
    %130 = vector.broadcast %cst_37 : f32 to vector<96x1xf32>
    %131 = arith.divf %129, %130 : vector<96x1xf32>
    %132 = vector.broadcast %124 : vector<96x1xf32> to vector<96x32xf32>
    %133 = arith.subf %120, %132 : vector<96x32xf32>
    %cst_38 = arith.constant 9.99999974E-6 : f32
    %134 = vector.broadcast %cst_38 : f32 to vector<96x1xf32>
    %135 = arith.addf %131, %134 : vector<96x1xf32>
    %136 = math.rsqrt %135 : vector<96x1xf32>
    %137 = vector.broadcast %136 : vector<96x1xf32> to vector<96x32xf32>
    %138 = arith.mulf %133, %137 : vector<96x32xf32>
    %139 = vector.extract_strided_slice %0 {offsets = [2, 0], sizes = [1, 32], strides = [1, 1]} : vector<27x64xf32> to vector<1x32xf32>
    %140 = vector.shape_cast %139 : vector<1x32xf32> to vector<32xf32>
    %141 = vector.shape_cast %140 : vector<32xf32> to vector<1x32xf32>
    %142 = vector.broadcast %141 : vector<1x32xf32> to vector<96x32xf32>
    %143 = arith.mulf %138, %142 : vector<96x32xf32>
    %144 = vector.extract_strided_slice %0 {offsets = [8, 0], sizes = [1, 32], strides = [1, 1]} : vector<27x64xf32> to vector<1x32xf32>
    %145 = vector.shape_cast %144 : vector<1x32xf32> to vector<32xf32>
    %146 = vector.shape_cast %145 : vector<32xf32> to vector<1x32xf32>
    %147 = vector.broadcast %146 : vector<1x32xf32> to vector<96x32xf32>
    %148 = arith.addf %143, %147 : vector<96x32xf32>
    %c128 = arith.constant 128 : index
    %c0_39 = arith.constant 0 : index
    %149 = vector.load %arg5[%c128, %c0_39] : memref<464x32xf32, #tpu.memory_space<vmem>>, vector<32x32xf32>
    %cst_40 = arith.constant dense<0.000000e+00> : vector<16x32xf32>
    %150 = tpu.matmul %118, %149, %cst_40 {dimension_numbers = #tpu.dot_dimension_numbers<[1], [0], [0], [1], [0, 0, 1, 1], [], []>} : vector<16x32xf32>, vector<32x32xf32>, vector<16x32xf32> -> vector<16x32xf32>
    %151 = vector.extract_strided_slice %0 {offsets = [16, 0], sizes = [1, 32], strides = [1, 1]} : vector<27x64xf32> to vector<1x32xf32>
    %152 = vector.shape_cast %151 : vector<1x32xf32> to vector<32xf32>
    %153 = vector.shape_cast %152 : vector<32xf32> to vector<1x32xf32>
    %154 = vector.broadcast %153 : vector<1x32xf32> to vector<16x32xf32>
    %155 = arith.addf %150, %154 : vector<16x32xf32>
    %c160 = arith.constant 160 : index
    %c0_41 = arith.constant 0 : index
    %156 = vector.load %arg5[%c160, %c0_41] : memref<464x32xf32, #tpu.memory_space<vmem>>, vector<32x32xf32>
    %cst_42 = arith.constant dense<0.000000e+00> : vector<96x32xf32>
    %157 = tpu.matmul %148, %156, %cst_42 {dimension_numbers = #tpu.dot_dimension_numbers<[1], [0], [0], [1], [0, 0, 1, 1], [], []>} : vector<96x32xf32>, vector<32x32xf32>, vector<96x32xf32> -> vector<96x32xf32>
    %158 = vector.extract_strided_slice %0 {offsets = [17, 0], sizes = [1, 32], strides = [1, 1]} : vector<27x64xf32> to vector<1x32xf32>
    %159 = vector.shape_cast %158 : vector<1x32xf32> to vector<32xf32>
    %160 = vector.shape_cast %159 : vector<32xf32> to vector<1x32xf32>
    %161 = vector.broadcast %160 : vector<1x32xf32> to vector<96x32xf32>
    %162 = arith.addf %157, %161 : vector<96x32xf32>
    %163 = vector.shape_cast %162 : vector<96x32xf32> to vector<2x48x32xf32>
    %c192 = arith.constant 192 : index
    %c0_43 = arith.constant 0 : index
    %164 = vector.load %arg5[%c192, %c0_43] : memref<464x32xf32, #tpu.memory_space<vmem>>, vector<32x32xf32>
    %cst_44 = arith.constant dense<0.000000e+00> : vector<96x32xf32>
    %165 = tpu.matmul %148, %164, %cst_44 {dimension_numbers = #tpu.dot_dimension_numbers<[1], [0], [0], [1], [0, 0, 1, 1], [], []>} : vector<96x32xf32>, vector<32x32xf32>, vector<96x32xf32> -> vector<96x32xf32>
    %166 = vector.extract_strided_slice %0 {offsets = [18, 0], sizes = [1, 32], strides = [1, 1]} : vector<27x64xf32> to vector<1x32xf32>
    %167 = vector.shape_cast %166 : vector<1x32xf32> to vector<32xf32>
    %168 = vector.shape_cast %167 : vector<32xf32> to vector<1x32xf32>
    %169 = vector.broadcast %168 : vector<1x32xf32> to vector<96x32xf32>
    %170 = arith.addf %165, %169 : vector<96x32xf32>
    %171 = vector.shape_cast %170 : vector<96x32xf32> to vector<2x48x32xf32>
    %172 = vector.shape_cast %155 : vector<16x32xf32> to vector<2x1x8x32xf32>
    %173 = vector.broadcast %172 : vector<2x1x8x32xf32> to vector<2x4x8x32xf32>
    %174 = vector.broadcast %2 : vector<1x4x1x32xf32> to vector<2x4x8x32xf32>
    %175 = arith.mulf %173, %174 : vector<2x4x8x32xf32>
    %176 = vector.shape_cast %175 : vector<2x4x8x32xf32> to vector<2x32x32xf32>
    "tpu.trace_start"() <{level = 10 : i32, message = "bnd,bkd->bnk"}> : () -> ()
    %cst_45 = arith.constant dense<0.000000e+00> : vector<2x32x48xf32>
    %177 = tpu.matmul %176, %163, %cst_45 {dimension_numbers = #tpu.dot_dimension_numbers<[2], [2], [1], [1], [0, 0, 0, 1, 1, 1], [0], [0]>} : vector<2x32x32xf32>, vector<2x48x32xf32>, vector<2x32x48xf32> -> vector<2x32x48xf32>
    "tpu.trace_stop"() : () -> ()
    %178 = arith.negf %177 : vector<2x32x48xf32>
    %179 = math.exp %178 : vector<2x32x48xf32>
    %cst_46 = arith.constant 1.000000e+00 : f32
    %180 = vector.broadcast %cst_46 : f32 to vector<2x32x48xf32>
    %181 = arith.addf %180, %179 : vector<2x32x48xf32>
    %182 = arith.divf %180, %181 : vector<2x32x48xf32>
    %183 = vector.shape_cast %182 : vector<2x32x48xf32> to vector<2x4x8x48xf32>
    %c0_47 = arith.constant 0 : index
    %c0_48 = arith.constant 0 : index
    %c0_49 = arith.constant 0 : index
    %184 = vector.load %arg4[%c0_47, %c0_48, %c0_49] : memref<2x8x48xf32, #tpu.memory_space<vmem>>, vector<2x8x48xf32>
    %185 = vector.shape_cast %184 : vector<2x8x48xf32> to vector<2x1x8x48xf32>
    %186 = vector.broadcast %185 : vector<2x1x8x48xf32> to vector<2x4x8x48xf32>
    %187 = arith.mulf %183, %186 : vector<2x4x8x48xf32>
    %188 = vector.shape_cast %187 : vector<2x4x8x48xf32> to vector<2x32x48xf32>
    "tpu.trace_start"() <{level = 10 : i32, message = "bnk,bkd->bnd"}> : () -> ()
    %cst_50 = arith.constant dense<0.000000e+00> : vector<2x32x32xf32>
    %189 = tpu.matmul %188, %171, %cst_50 {dimension_numbers = #tpu.dot_dimension_numbers<[2], [1], [1], [2], [0, 0, 0, 1, 1, 2], [0], [0]>} : vector<2x32x48xf32>, vector<2x48x32xf32>, vector<2x32x32xf32> -> vector<2x32x32xf32>
    "tpu.trace_stop"() : () -> ()
    %190 = vector.shape_cast %189 : vector<2x32x32xf32> to vector<2x4x8x32xf32>
    %191 = vector.broadcast %2 : vector<1x4x1x32xf32> to vector<2x4x8x32xf32>
    %192 = arith.mulf %190, %191 : vector<2x4x8x32xf32>
    %cst_51 = arith.constant dense<0.000000e+00> : vector<2x8x32xf32>
    %193 = vector.multi_reduction <add>, %192, %cst_51 [1] : vector<2x4x8x32xf32> to vector<2x8x32xf32>
    %194 = vector.shape_cast %193 : vector<2x8x32xf32> to vector<16x32xf32>
    %cst_52 = arith.constant dense<0.000000e+00> : vector<16xf32>
    %195 = vector.multi_reduction <add>, %194, %cst_52 [1] : vector<16x32xf32> to vector<16xf32>
    %196 = vector.shape_cast %195 : vector<16xf32> to vector<16x1xf32>
    %cst_53 = arith.constant 3.200000e+01 : f32
    %197 = vector.broadcast %cst_53 : f32 to vector<16x1xf32>
    %198 = arith.divf %196, %197 : vector<16x1xf32>
    %199 = vector.broadcast %198 : vector<16x1xf32> to vector<16x32xf32>
    %200 = arith.subf %194, %199 : vector<16x32xf32>
    %201 = arith.mulf %200, %200 : vector<16x32xf32>
    %cst_54 = arith.constant dense<0.000000e+00> : vector<16xf32>
    %202 = vector.multi_reduction <add>, %201, %cst_54 [1] : vector<16x32xf32> to vector<16xf32>
    %203 = vector.shape_cast %202 : vector<16xf32> to vector<16x1xf32>
    %cst_55 = arith.constant 3.200000e+01 : f32
    %204 = vector.broadcast %cst_55 : f32 to vector<16x1xf32>
    %205 = arith.divf %203, %204 : vector<16x1xf32>
    %206 = vector.broadcast %198 : vector<16x1xf32> to vector<16x32xf32>
    %207 = arith.subf %194, %206 : vector<16x32xf32>
    %cst_56 = arith.constant 9.99999974E-6 : f32
    %208 = vector.broadcast %cst_56 : f32 to vector<16x1xf32>
    %209 = arith.addf %205, %208 : vector<16x1xf32>
    %210 = math.rsqrt %209 : vector<16x1xf32>
    %211 = vector.broadcast %210 : vector<16x1xf32> to vector<16x32xf32>
    %212 = arith.mulf %207, %211 : vector<16x32xf32>
    %213 = vector.extract_strided_slice %0 {offsets = [3, 0], sizes = [1, 32], strides = [1, 1]} : vector<27x64xf32> to vector<1x32xf32>
    %214 = vector.shape_cast %213 : vector<1x32xf32> to vector<32xf32>
    %215 = vector.shape_cast %214 : vector<32xf32> to vector<1x32xf32>
    %216 = vector.broadcast %215 : vector<1x32xf32> to vector<16x32xf32>
    %217 = arith.mulf %212, %216 : vector<16x32xf32>
    %218 = vector.extract_strided_slice %0 {offsets = [9, 0], sizes = [1, 32], strides = [1, 1]} : vector<27x64xf32> to vector<1x32xf32>
    %219 = vector.shape_cast %218 : vector<1x32xf32> to vector<32xf32>
    %220 = vector.shape_cast %219 : vector<32xf32> to vector<1x32xf32>
    %221 = vector.broadcast %220 : vector<1x32xf32> to vector<16x32xf32>
    %222 = arith.addf %217, %221 : vector<16x32xf32>
    %cst_57 = arith.constant dense<0.000000e+00> : vector<2x8x48xf32>
    %223 = vector.multi_reduction <add>, %187, %cst_57 [1] : vector<2x4x8x48xf32> to vector<2x8x48xf32>
    %cst_58 = arith.constant 2.500000e-01 : f32
    %224 = vector.broadcast %cst_58 : f32 to vector<2x8x48xf32>
    %225 = arith.mulf %223, %224 : vector<2x8x48xf32>
    %226 = vector.shape_cast %225 : vector<2x8x48xf32> to vector<16x48xf32>
    %c416 = arith.constant 416 : index
    %c0_59 = arith.constant 0 : index
    %227 = vector.load %arg5[%c416, %c0_59] : memref<464x32xf32, #tpu.memory_space<vmem>>, vector<48x32xf32>
    %cst_60 = arith.constant dense<0.000000e+00> : vector<16x32xf32>
    %228 = tpu.matmul %226, %227, %cst_60 {dimension_numbers = #tpu.dot_dimension_numbers<[1], [0], [0], [1], [0, 0, 1, 1], [], []>} : vector<16x48xf32>, vector<48x32xf32>, vector<16x32xf32> -> vector<16x32xf32>
    %229 = tpu.concatenate %90, %222 in 1 : vector<16x32xf32>, vector<16x32xf32> -> vector<16x64xf32>
    %c224 = arith.constant 224 : index
    %c0_61 = arith.constant 0 : index
    %230 = vector.load %arg5[%c224, %c0_61] : memref<464x32xf32, #tpu.memory_space<vmem>>, vector<64x32xf32>
    %cst_62 = arith.constant dense<0.000000e+00> : vector<16x32xf32>
    %231 = tpu.matmul %229, %230, %cst_62 {dimension_numbers = #tpu.dot_dimension_numbers<[1], [0], [0], [1], [0, 0, 1, 1], [], []>} : vector<16x64xf32>, vector<64x32xf32>, vector<16x32xf32> -> vector<16x32xf32>
    %232 = vector.extract_strided_slice %0 {offsets = [19, 0], sizes = [1, 32], strides = [1, 1]} : vector<27x64xf32> to vector<1x32xf32>
    %233 = vector.shape_cast %232 : vector<1x32xf32> to vector<32xf32>
    %234 = vector.shape_cast %233 : vector<32xf32> to vector<1x32xf32>
    %235 = vector.broadcast %234 : vector<1x32xf32> to vector<16x32xf32>
    %236 = arith.addf %231, %235 : vector<16x32xf32>
    %cst_63 = arith.constant 0.000000e+00 : f32
    %237 = vector.broadcast %cst_63 : f32 to vector<16x32xf32>
    %238 = arith.maximumf %236, %237 : vector<16x32xf32>
    %239 = vector.extract_strided_slice %0 {offsets = [26, 0], sizes = [1, 32], strides = [1, 1]} : vector<27x64xf32> to vector<1x32xf32>
    %240 = vector.shape_cast %239 : vector<1x32xf32> to vector<32xf32>
    %241 = vector.shape_cast %240 : vector<32xf32> to vector<1x32xf32>
    %242 = vector.broadcast %241 : vector<1x32xf32> to vector<16x32xf32>
    %243 = arith.mulf %238, %242 : vector<16x32xf32>
    %cst_64 = arith.constant dense<0.000000e+00> : vector<16xf32>
    %244 = vector.multi_reduction <add>, %243, %cst_64 [1] : vector<16x32xf32> to vector<16xf32>
    %245 = vector.shape_cast %244 : vector<16xf32> to vector<16x1xf32>
    %cst_65 = arith.constant 5.000000e-02 : f32
    %246 = vector.broadcast %cst_65 : f32 to vector<16x1xf32>
    %247 = arith.addf %245, %246 : vector<16x1xf32>
    %248 = arith.negf %247 : vector<16x1xf32>
    %249 = math.exp %248 : vector<16x1xf32>
    %cst_66 = arith.constant 1.000000e+00 : f32
    %250 = vector.broadcast %cst_66 : f32 to vector<16x1xf32>
    %251 = arith.addf %250, %249 : vector<16x1xf32>
    %252 = arith.divf %250, %251 : vector<16x1xf32>
    %cst_67 = arith.constant 1.000000e+00 : f32
    %253 = vector.broadcast %cst_67 : f32 to vector<16x1xf32>
    %254 = arith.subf %253, %252 : vector<16x1xf32>
    %255 = vector.broadcast %254 : vector<16x1xf32> to vector<16x32xf32>
    %256 = arith.mulf %255, %90 : vector<16x32xf32>
    %257 = vector.broadcast %252 : vector<16x1xf32> to vector<16x32xf32>
    %258 = arith.mulf %257, %222 : vector<16x32xf32>
    %259 = arith.addf %256, %258 : vector<16x32xf32>
    %cst_68 = arith.constant dense<0.000000e+00> : vector<16xf32>
    %260 = vector.multi_reduction <add>, %259, %cst_68 [1] : vector<16x32xf32> to vector<16xf32>
    %261 = vector.shape_cast %260 : vector<16xf32> to vector<16x1xf32>
    %cst_69 = arith.constant 3.200000e+01 : f32
    %262 = vector.broadcast %cst_69 : f32 to vector<16x1xf32>
    %263 = arith.divf %261, %262 : vector<16x1xf32>
    %264 = vector.broadcast %263 : vector<16x1xf32> to vector<16x32xf32>
    %265 = arith.subf %259, %264 : vector<16x32xf32>
    %266 = arith.mulf %265, %265 : vector<16x32xf32>
    %cst_70 = arith.constant dense<0.000000e+00> : vector<16xf32>
    %267 = vector.multi_reduction <add>, %266, %cst_70 [1] : vector<16x32xf32> to vector<16xf32>
    %268 = vector.shape_cast %267 : vector<16xf32> to vector<16x1xf32>
    %cst_71 = arith.constant 3.200000e+01 : f32
    %269 = vector.broadcast %cst_71 : f32 to vector<16x1xf32>
    %270 = arith.divf %268, %269 : vector<16x1xf32>
    %271 = vector.broadcast %263 : vector<16x1xf32> to vector<16x32xf32>
    %272 = arith.subf %259, %271 : vector<16x32xf32>
    %cst_72 = arith.constant 9.99999974E-6 : f32
    %273 = vector.broadcast %cst_72 : f32 to vector<16x1xf32>
    %274 = arith.addf %270, %273 : vector<16x1xf32>
    %275 = math.rsqrt %274 : vector<16x1xf32>
    %276 = vector.broadcast %275 : vector<16x1xf32> to vector<16x32xf32>
    %277 = arith.mulf %272, %276 : vector<16x32xf32>
    %278 = vector.extract_strided_slice %0 {offsets = [4, 0], sizes = [1, 32], strides = [1, 1]} : vector<27x64xf32> to vector<1x32xf32>
    %279 = vector.shape_cast %278 : vector<1x32xf32> to vector<32xf32>
    %280 = vector.shape_cast %279 : vector<32xf32> to vector<1x32xf32>
    %281 = vector.broadcast %280 : vector<1x32xf32> to vector<16x32xf32>
    %282 = arith.mulf %277, %281 : vector<16x32xf32>
    %283 = vector.extract_strided_slice %0 {offsets = [10, 0], sizes = [1, 32], strides = [1, 1]} : vector<27x64xf32> to vector<1x32xf32>
    %284 = vector.shape_cast %283 : vector<1x32xf32> to vector<32xf32>
    %285 = vector.shape_cast %284 : vector<32xf32> to vector<1x32xf32>
    %286 = vector.broadcast %285 : vector<1x32xf32> to vector<16x32xf32>
    %287 = arith.addf %282, %286 : vector<16x32xf32>
    %cst_73 = arith.constant dense<0.000000e+00> : vector<16xf32>
    %288 = vector.multi_reduction <add>, %287, %cst_73 [1] : vector<16x32xf32> to vector<16xf32>
    %289 = vector.shape_cast %288 : vector<16xf32> to vector<16x1xf32>
    %cst_74 = arith.constant 3.200000e+01 : f32
    %290 = vector.broadcast %cst_74 : f32 to vector<16x1xf32>
    %291 = arith.divf %289, %290 : vector<16x1xf32>
    %292 = vector.broadcast %291 : vector<16x1xf32> to vector<16x32xf32>
    %293 = arith.subf %287, %292 : vector<16x32xf32>
    %294 = arith.mulf %293, %293 : vector<16x32xf32>
    %cst_75 = arith.constant dense<0.000000e+00> : vector<16xf32>
    %295 = vector.multi_reduction <add>, %294, %cst_75 [1] : vector<16x32xf32> to vector<16xf32>
    %296 = vector.shape_cast %295 : vector<16xf32> to vector<16x1xf32>
    %cst_76 = arith.constant 3.200000e+01 : f32
    %297 = vector.broadcast %cst_76 : f32 to vector<16x1xf32>
    %298 = arith.divf %296, %297 : vector<16x1xf32>
    %299 = vector.broadcast %291 : vector<16x1xf32> to vector<16x32xf32>
    %300 = arith.subf %287, %299 : vector<16x32xf32>
    %cst_77 = arith.constant 9.99999974E-6 : f32
    %301 = vector.broadcast %cst_77 : f32 to vector<16x1xf32>
    %302 = arith.addf %298, %301 : vector<16x1xf32>
    %303 = math.rsqrt %302 : vector<16x1xf32>
    %304 = vector.broadcast %303 : vector<16x1xf32> to vector<16x32xf32>
    %305 = arith.mulf %300, %304 : vector<16x32xf32>
    %306 = vector.extract_strided_slice %0 {offsets = [5, 0], sizes = [1, 32], strides = [1, 1]} : vector<27x64xf32> to vector<1x32xf32>
    %307 = vector.shape_cast %306 : vector<1x32xf32> to vector<32xf32>
    %308 = vector.shape_cast %307 : vector<32xf32> to vector<1x32xf32>
    %309 = vector.broadcast %308 : vector<1x32xf32> to vector<16x32xf32>
    %310 = arith.mulf %305, %309 : vector<16x32xf32>
    %311 = vector.extract_strided_slice %0 {offsets = [11, 0], sizes = [1, 32], strides = [1, 1]} : vector<27x64xf32> to vector<1x32xf32>
    %312 = vector.shape_cast %311 : vector<1x32xf32> to vector<32xf32>
    %313 = vector.shape_cast %312 : vector<32xf32> to vector<1x32xf32>
    %314 = vector.broadcast %313 : vector<1x32xf32> to vector<16x32xf32>
    %315 = arith.addf %310, %314 : vector<16x32xf32>
    %c288 = arith.constant 288 : index
    %c0_78 = arith.constant 0 : index
    %316 = vector.load %arg5[%c288, %c0_78] : memref<464x32xf32, #tpu.memory_space<vmem>>, vector<64x32xf32>
    %cst_79 = arith.constant dense<0.000000e+00> : vector<16x64xf32>
    %317 = tpu.matmul %315, %316, %cst_79 {dimension_numbers = #tpu.dot_dimension_numbers<[1], [1], [0], [0], [0, 0, 1, 0], [], []>} : vector<16x32xf32>, vector<64x32xf32>, vector<16x64xf32> -> vector<16x64xf32>
    %318 = vector.extract_strided_slice %0 {offsets = [21, 0], sizes = [1, 64], strides = [1, 1]} : vector<27x64xf32> to vector<1x64xf32>
    %319 = vector.shape_cast %318 : vector<1x64xf32> to vector<64xf32>
    %320 = vector.shape_cast %319 : vector<64xf32> to vector<1x64xf32>
    %321 = vector.broadcast %320 : vector<1x64xf32> to vector<16x64xf32>
    %322 = arith.addf %317, %321 : vector<16x64xf32>
    %cst_80 = arith.constant 0.000000e+00 : f32
    %323 = vector.broadcast %cst_80 : f32 to vector<16x64xf32>
    %324 = arith.maximumf %322, %323 : vector<16x64xf32>
    %c352 = arith.constant 352 : index
    %c0_81 = arith.constant 0 : index
    %325 = vector.load %arg5[%c352, %c0_81] : memref<464x32xf32, #tpu.memory_space<vmem>>, vector<64x32xf32>
    %cst_82 = arith.constant dense<0.000000e+00> : vector<16x32xf32>
    %326 = tpu.matmul %324, %325, %cst_82 {dimension_numbers = #tpu.dot_dimension_numbers<[1], [0], [0], [1], [0, 0, 1, 1], [], []>} : vector<16x64xf32>, vector<64x32xf32>, vector<16x32xf32> -> vector<16x32xf32>
    %327 = vector.extract_strided_slice %0 {offsets = [20, 0], sizes = [1, 32], strides = [1, 1]} : vector<27x64xf32> to vector<1x32xf32>
    %328 = vector.shape_cast %327 : vector<1x32xf32> to vector<32xf32>
    %329 = vector.shape_cast %328 : vector<32xf32> to vector<1x32xf32>
    %330 = vector.broadcast %329 : vector<1x32xf32> to vector<16x32xf32>
    %331 = arith.addf %326, %330 : vector<16x32xf32>
    %332 = arith.addf %287, %331 : vector<16x32xf32>
    %333 = vector.shape_cast %332 : vector<16x32xf32> to vector<2x8x32xf32>
    %334 = vector.shape_cast %228 : vector<16x32xf32> to vector<2x8x32xf32>
    %335 = vector.shape_cast %252 : vector<16x1xf32> to vector<2x8x1xf32>
    %336 = vector.shape_cast %335 : vector<2x8x1xf32> to vector<2x8x1xf32>
    %337 = vector.broadcast %336 : vector<2x8x1xf32> to vector<2x8x64xf32>
    %338 = tpu.concatenate %333, %334, %337 in 2 : vector<2x8x32xf32>, vector<2x8x32xf32>, vector<2x8x64xf32> -> vector<2x8x128xf32>
    %c0_83 = arith.constant 0 : index
    %c0_84 = arith.constant 0 : index
    %c0_85 = arith.constant 0 : index
    %339 = vector.load %arg7[%c0_83, %c0_84, %c0_85] : memref<2x8x128xf32, #tpu.memory_space<vmem>>, vector<2x8x128xf32>
    tpu.vector_store %arg7[%c0_83, %c0_84, %c0_85], %338 {strides = array<i32>} : memref<2x8x128xf32, #tpu.memory_space<vmem>>, vector<2x8x128xf32>,
    return
  }
  func.func @transform_0(%arg0: i32) -> (i32, i32, i32) {
    %c0_i32 = arith.constant 0 : i32
    %c0_i32_0 = arith.constant 0 : i32
    %c0_i32_1 = arith.constant 0 : i32
    %c0_i32_2 = arith.constant 0 : i32
    return %c0_i32, %c0_i32_0, %c0_i32_1 : i32, i32, i32
  }
  func.func @transform_1(%arg0: i32) -> (i32, i32, i32, i32) {
    %c0_i32 = arith.constant 0 : i32
    %c0_i32_0 = arith.constant 0 : i32
    %c0_i32_1 = arith.constant 0 : i32
    %c0_i32_2 = arith.constant 0 : i32
    %c0_i32_3 = arith.constant 0 : i32
    return %c0_i32, %c0_i32_0, %c0_i32_1, %c0_i32_2 : i32, i32, i32, i32
  }
  func.func @transform_2(%arg0: i32) -> (i32, i32, i32) {
    %c0_i32 = arith.constant 0 : i32
    %c0_i32_0 = arith.constant 0 : i32
    %c0_i32_1 = arith.constant 0 : i32
    %c0_i32_2 = arith.constant 0 : i32
    return %c0_i32, %c0_i32_0, %c0_i32_1 : i32, i32, i32
  }
  func.func @transform_3(%arg0: i32) -> (i32, i32, i32) {
    %c0_i32 = arith.constant 0 : i32
    %c0_i32_0 = arith.constant 0 : i32
    %c0_i32_1 = arith.constant 0 : i32
    %c0_i32_2 = arith.constant 0 : i32
    return %c0_i32, %c0_i32_0, %c0_i32_1 : i32, i32, i32
  }
  func.func @transform_4(%arg0: i32) -> (i32, i32) {
    %c0_i32 = arith.constant 0 : i32
    %c0_i32_0 = arith.constant 0 : i32
    %c0_i32_1 = arith.constant 0 : i32
    return %c0_i32, %c0_i32_0 : i32, i32
  }
  func.func @transform_5(%arg0: i32) -> (i32, i32) {
    %c0_i32 = arith.constant 0 : i32
    %c0_i32_0 = arith.constant 0 : i32
    %c0_i32_1 = arith.constant 0 : i32
    return %c0_i32, %c0_i32_0 : i32, i32
  }
  func.func @transform_6(%arg0: i32) -> (i32, i32, i32) {
    %c0_i32 = arith.constant 0 : i32
    %c0_i32_0 = arith.constant 0 : i32
    %c0_i32_1 = arith.constant 0 : i32
    %c0_i32_2 = arith.constant 0 : i32
    return %c0_i32, %c0_i32_0, %c0_i32_1 : i32, i32, i32
  }
}

</mosaic_0001>

<llo_original>
// kernel: tpu_custom_call.1
$region0: #{tpu_custom_call.1}
  #allocation0 [shape = 'u32[]', space=smem, size = 0x4, offset = 0x4, fixed_abs, tag = 'smem constant byte address 0x4 - core index']
  #allocation1 [shape = 'u32[72,128]{1,0:T(1,128)}', space=vmem, size = 0x9000, scoped, tag = 'internal scratch']
  %s0 = inlined_call_operand.vmem [shape: f32[2,8,32], index: 0, kind: input, shape index: {}]
  %s1 = inlined_call_operand.vmem [shape: f32[2,3,16,32], index: 1, kind: input, shape index: {}]
  %s2 = inlined_call_operand.vmem [shape: f32[2,8,8], index: 2, kind: input, shape index: {}]
  %s3 = inlined_call_operand.vmem [shape: f32[2,8,48], index: 3, kind: input, shape index: {}]
  %s4 = inlined_call_operand.vmem [shape: f32[464,32], index: 4, kind: input, shape index: {}]
  %s5 = inlined_call_operand.vmem [shape: f32[27,64], index: 5, kind: input, shape index: {}]
  %s6 = inlined_call_operand.hbm [shape: f32[2,8,128], index: 6, kind: output, shape index: {}]
  %s7 = sld [smem:[#allocation0]]
  $region34: #{tpu_custom_call.1} parent=0
    _
  %s9 = ssub.s32 1, %s7
  %s10 = scalar_select 0, %s9, %s7
  $region1: #{tpu_custom_call.1} parent=0
    #allocation2 [shape = 'u8[8192]{0}', space=vmem, size = 0x2000, scoped, tag = 'output window, operand 0, single buffered']
    #allocation3 [shape = 's32[1]{0}', space=sflag, size = 0x4, scoped, tag = 'scoped memory for tpu_custom_call.1']
    %11 = vsyncpa [#allocation3], 0
    // Predicated region
    $region2: #{tpu_custom_call.1} parent=1 // pred_check
      _
    $region3: #{tpu_custom_call.1} parent=1 // pred_check_branch
      %13 = sbr.rel (0) target = $region5
    $region4: #{tpu_custom_call.1} parent=1 // pred_region
      _
    $region5: #{tpu_custom_call.1} parent=1 // pred_fallthru
      _
    // Predicated region
    $region6: #{tpu_custom_call.1} parent=1 // pred_check
      _
    $region7: #{tpu_custom_call.1} parent=1 // pred_check_branch
      %15 = sbr.rel (0) target = $region9
    $region8: #{tpu_custom_call.1} parent=1 // pred_region
      _
    $region9: #{tpu_custom_call.1} parent=1 // pred_fallthru
      _
    // Predicated region
    $region10: #{tpu_custom_call.1} parent=1 // pred_check
      _
    $region11: #{tpu_custom_call.1} parent=1 // pred_check_branch
      %17 = sbr.rel (0) target = $region13
    $region12: #{tpu_custom_call.1} parent=1 // pred_region
      _
    $region13: #{tpu_custom_call.1} parent=1 // pred_fallthru
      _
    // Predicated region
    $region14: #{tpu_custom_call.1} parent=1 // pred_check
      _
    $region15: #{tpu_custom_call.1} parent=1 // pred_check_branch
      %19 = sbr.rel (0) target = $region17
    $region16: #{tpu_custom_call.1} parent=1 // pred_region
      _
    $region17: #{tpu_custom_call.1} parent=1 // pred_fallthru
      _
    // Predicated region
    $region18: #{tpu_custom_call.1} parent=1 // pred_check
      _
    $region19: #{tpu_custom_call.1} parent=1 // pred_check_branch
      %21 = sbr.rel (0) target = $region21
    $region20: #{tpu_custom_call.1} parent=1 // pred_region
      _
    $region21: #{tpu_custom_call.1} parent=1 // pred_fallthru
      _
    // Predicated region
    $region22: #{tpu_custom_call.1} parent=1 // pred_check
      _
    $region23: #{tpu_custom_call.1} parent=1 // pred_check_branch
      %23 = sbr.rel (0) target = $region25
    $region24: #{tpu_custom_call.1} parent=1 // pred_region
      _
    $region25: #{tpu_custom_call.1} parent=1 // pred_fallthru
      _
    %v24 = vld [vmem:[%s5] sm:$0xff]
    %v25 = vld [vmem:[%s5 + $0x8] sm:$0xff]
    %v26 = vld [vmem:[%s5 + $0x10] sm:$0xff]
    %v27 = vld [vmem:[%s5 + $0x18] sm:$0x7]
    %30 = vst [vmem:[#allocation1] sm:$0xff] %v26
    %s31 = scalar_lea.vmem [#allocation1], 6
    %v32 = vld [vmem:[%s31] ss:$9 sm:$0xff]
    %s33 = scalar_lea.vmem [#allocation1], 7
    %v34 = vld [vmem:[%s33] ss:$9 sm:$0xff]
    %35 = vst [vmem:[#allocation1] sm:$0xff] %v27
    %v36 = vld [vmem:[#allocation1] ss:$9 sm:$0xff]
    %s37 = scalar_lea.vmem [#allocation1], 1
    %v38 = vld [vmem:[%s37] ss:$9 sm:$0xff]
    %v39 = vld [vmem:[%s0] sm:$0xff]
    %v40 = vld [vmem:[%s0 + $0x8] sm:$0xff]
    %vm41 = vcmask 261120
    %v42 = vsel %vm41, %v39, 0.0
    %43 = vadd.xlane.f32.xlu0 %v42
    %v44 = vpop.xlane.xlu0 %43
    %v45 = vsel %vm41, %v40, 0.0
    %46 = vadd.xlane.f32.xlu0 %v45
    %v47 = vpop.xlane.xlu0 %46
    %v48 = vrcp.pop 32.0
    %v49 = vmul.f32 32.0, %v48
    %v50 = vsub.f32 1.0, %v49
    %v51 = vmul.f32 %v48, %v50
    %v52 = vadd.f32 %v48, %v51
    %vm53 = vweird.f32 %v48
    %v54 = vsel %vm53, %v48, %v52
    %v55 = vmul.f32 %v44, %v54
    %v56 = vmul.f32 %v47, %v54
    %v57 = vsub.f32 %v39, %v55
    %v58 = vsub.f32 %v40, %v56
    %v59 = vmul.f32 %v57, %v57
    %v60 = vmul.f32 %v58, %v58
    %v61 = vsel %vm41, %v59, 0.0
    %62 = vadd.xlane.f32.xlu0 %v61
    %v63 = vpop.xlane.xlu0 %62
    %v64 = vsel %vm41, %v60, 0.0
    %65 = vadd.xlane.f32.xlu0 %v64
    %v66 = vpop.xlane.xlu0 %65
    %v67 = vmul.f32 %v63, %v54
    %v68 = vmul.f32 %v66, %v54
    %v69 = vadd.f32 %v67, 1e-05
    %v70 = vadd.f32 %v68, 1e-05
    %v71 = vrsqrt.pop %v69
    %v72 = vmul.f32 %v71, %v69
    %v73 = vmul.f32 %v72, %v71
    %v74 = vmul.f32 0.5, %v73
    %v75 = vsub.f32 1.5, %v74
    %v76 = vmul.f32 %v71, %v75
    %vm77 = vweird.f32 %v69
    %vm78 = vweird.f32 %v71
    %vm79 = vmor %vm77, %vm78
    %v80 = vsel %vm79, %v71, %v76
    %v81 = vrsqrt.pop %v70
    %v82 = vmul.f32 %v81, %v70
    %v83 = vmul.f32 %v82, %v81
    %v84 = vmul.f32 0.5, %v83
    %v85 = vsub.f32 1.5, %v84
    %v86 = vmul.f32 %v81, %v85
    %vm87 = vweird.f32 %v70
    %vm88 = vweird.f32 %v81
    %vm89 = vmor %vm87, %vm88
    %v90 = vsel %vm89, %v81, %v86
    %v91 = vmul.f32 %v57, %v80
    %v92 = vmul.f32 %v58, %v90
    %v93 = vperm.slane %v24, 0
    %v94 = vmul.f32 %v91, %v93
    %v95 = vmul.f32 %v92, %v93
    %v96 = vperm.slane %v24, 6
    %v97 = vadd.f32 %v94, %v96
    %v98 = vadd.f32 %v95, %v96
    %v99 = vld [vmem:[%s4] sm:$0xff]
    %v100 = vld [vmem:[%s4 + $0x8] sm:$0xff]
    %v101 = vld [vmem:[%s4 + $0x10] sm:$0xff]
    %v102 = vld [vmem:[%s4 + $0x18] sm:$0xff]
    %v103 = vperm.slane %v25, 4
    %v105 = vsel %vm41, %v97, 0
    %v108 = vsel %vm41, %v98, 0
    %110 = vmatpush.msra.mxu0 0.0
    %111 = vmatpush.msra.mxu0 0.0
    %112 = vmatpush.msra.mxu0 0.0
    %113 = vmatpush.msra.mxu0 0.0
    %114 = vmatpush.msra.mxu0 0.0
    %115 = vmatpush.msra.mxu0 0.0
    %116 = vmatpush.msra.mxu0 0.0
    %117 = vmatpush.msra.mxu0 0.0
    %118 = vmatpush.msra.mxu0 0.0
    %119 = vmatpush.msra.mxu0 0.0
    %120 = vmatpush.msra.mxu0 0.0
    %121 = vmatpush.msra.mxu0 0.0
    %122 = vmatpush.msra.mxu0 %v102
    %123 = vmatpush.msra.mxu0 %v101
    %124 = vmatpush.msra.mxu0 %v100
    %125 = vmatpush.msra.mxu0 %v99
    %126 = vmatmul.f32.gmra.mxu0 %v105
    %v127 = vpop.f32.mrf.mxu0
    %v128 = vadd.f32 %v103, %v127
    %129 = vmatmul.f32.gmra.mxu0 %v108
    %v130 = vpop.f32.mrf.mxu0
    %v131 = vadd.f32 %v103, %v130
    %132 = vdwg.mxu0
    %v133 = vld [vmem:[%s4 + $0x20] sm:$0xff]
    %v134 = vld [vmem:[%s4 + $0x28] sm:$0xff]
    %v135 = vld [vmem:[%s4 + $0x30] sm:$0xff]
    %v136 = vld [vmem:[%s4 + $0x38] sm:$0xff]
    %v137 = vperm.slane %v25, 5
    %138 = vmatpush.msra.mxu0 0.0
    %139 = vmatpush.msra.mxu0 0.0
    %140 = vmatpush.msra.mxu0 0.0
    %141 = vmatpush.msra.mxu0 0.0
    %142 = vmatpush.msra.mxu0 0.0
    %143 = vmatpush.msra.mxu0 0.0
    %144 = vmatpush.msra.mxu0 0.0
    %145 = vmatpush.msra.mxu0 0.0
    %146 = vmatpush.msra.mxu0 0.0
    %147 = vmatpush.msra.mxu0 0.0
    %148 = vmatpush.msra.mxu0 0.0
    %149 = vmatpush.msra.mxu0 0.0
    %150 = vmatpush.msra.mxu0 %v136
    %151 = vmatpush.msra.mxu0 %v135
    %152 = vmatpush.msra.mxu0 %v134
    %153 = vmatpush.msra.mxu0 %v133
    %154 = vmatmul.f32.gmra.mxu0 %v105
    %v155 = vpop.f32.mrf.mxu0
    %v156 = vadd.f32 %v137, %v155
    %157 = vmatmul.f32.gmra.mxu0 %v108
    %v158 = vpop.f32.mrf.mxu0
    %v159 = vadd.f32 %v137, %v158
    %160 = vdwg.mxu0
    %v161 = vld [vmem:[%s4 + $0x40] sm:$0xff]
    %v162 = vld [vmem:[%s4 + $0x48] sm:$0xff]
    %v163 = vld [vmem:[%s4 + $0x50] sm:$0xff]
    %v164 = vld [vmem:[%s4 + $0x58] sm:$0xff]
    %v165 = vperm.slane %v25, 6
    %166 = vmatpush.msra.mxu0 0.0
    %167 = vmatpush.msra.mxu0 0.0
    %168 = vmatpush.msra.mxu0 0.0
    %169 = vmatpush.msra.mxu0 0.0
    %170 = vmatpush.msra.mxu0 0.0
    %171 = vmatpush.msra.mxu0 0.0
    %172 = vmatpush.msra.mxu0 0.0
    %173 = vmatpush.msra.mxu0 0.0
    %174 = vmatpush.msra.mxu0 0.0
    %175 = vmatpush.msra.mxu0 0.0
    %176 = vmatpush.msra.mxu0 0.0
    %177 = vmatpush.msra.mxu0 0.0
    %178 = vmatpush.msra.mxu0 %v164
    %179 = vmatpush.msra.mxu0 %v163
    %180 = vmatpush.msra.mxu0 %v162
    %181 = vmatpush.msra.mxu0 %v161
    %182 = vmatmul.f32.gmra.mxu0 %v105
    %v183 = vpop.f32.mrf.mxu0
    %v184 = vadd.f32 %v165, %v183
    %185 = vmatmul.f32.gmra.mxu0 %v108
    %v186 = vpop.f32.mrf.mxu0
    %v187 = vadd.f32 %v165, %v186
    %188 = vdwg.mxu0
    %v189 = vperm.slane %v32, 0
    %v190 = vperm.slane %v34, 0
    %v191 = vperm.slane %v36, 0
    %v192 = vperm.slane %v38, 0
    %v197 = vmul.f32 %v128, %v189
    %v198 = vmul.f32 %v128, %v190
    %v199 = vmul.f32 %v128, %v191
    %v200 = vmul.f32 %v128, %v192
    %v201 = vmul.f32 %v131, %v189
    %v202 = vmul.f32 %v131, %v190
    %v203 = vmul.f32 %v131, %v191
    %v204 = vmul.f32 %v131, %v192
    %v206 = vsel %vm41, %v197, 0
    %v209 = vsel %vm41, %v198, 0
    %v212 = vsel %vm41, %v199, 0
    %v215 = vsel %vm41, %v200, 0
    %v218 = vsel %vm41, %v156, 0
    %220 = vmatpush.xpose.msra.mxu0 0.0
    %221 = vmatpush.xpose.msra.mxu0 0.0
    %222 = vmatpush.xpose.msra.mxu0 0.0
    %223 = vmatpush.xpose.msra.mxu0 0.0
    %224 = vmatpush.xpose.msra.mxu0 0.0
    %225 = vmatpush.xpose.msra.mxu0 0.0
    %226 = vmatpush.xpose.msra.mxu0 0.0
    %227 = vmatpush.xpose.msra.mxu0 0.0
    %228 = vmatpush.xpose.msra.mxu0 0.0
    %229 = vmatpush.xpose.msra.mxu0 0.0
    %230 = vmatpush.xpose.msra.mxu0 0.0
    %231 = vmatpush.xpose.msra.mxu0 0.0
    %232 = vmatpush.xpose.msra.mxu0 0.0
    %233 = vmatpush.xpose.msra.mxu0 0.0
    %234 = vmatpush.xpose.msra.mxu0 0.0
    %235 = vmatpush.xpose.msra.mxu0 %v218
    %236 = vmatmul.f32.gmra.mxu0 %v206
    %v237 = vpop.f32.mrf.mxu0
    %v238 = vadd.f32 0.0, %v237
    %239 = vmatmul.f32.gmra.mxu0 %v209
    %v240 = vpop.f32.mrf.mxu0
    %v241 = vadd.f32 0.0, %v240
    %242 = vmatmul.f32.gmra.mxu0 %v212
    %v243 = vpop.f32.mrf.mxu0
    %v244 = vadd.f32 0.0, %v243
    %245 = vmatmul.f32.gmra.mxu0 %v215
    %v246 = vpop.f32.mrf.mxu0
    %v247 = vadd.f32 0.0, %v246
    %248 = vdwg.mxu0
    %v250 = vsel %vm41, %v201, 0
    %v253 = vsel %vm41, %v202, 0
    %v256 = vsel %vm41, %v203, 0
    %v259 = vsel %vm41, %v204, 0
    %v262 = vsel %vm41, %v159, 0
    %264 = vmatpush.xpose.msra.mxu0 0.0
    %265 = vmatpush.xpose.msra.mxu0 0.0
    %266 = vmatpush.xpose.msra.mxu0 0.0
    %267 = vmatpush.xpose.msra.mxu0 0.0
    %268 = vmatpush.xpose.msra.mxu0 0.0
    %269 = vmatpush.xpose.msra.mxu0 0.0
    %270 = vmatpush.xpose.msra.mxu0 0.0
    %271 = vmatpush.xpose.msra.mxu0 0.0
    %272 = vmatpush.xpose.msra.mxu0 0.0
    %273 = vmatpush.xpose.msra.mxu0 0.0
    %274 = vmatpush.xpose.msra.mxu0 0.0
    %275 = vmatpush.xpose.msra.mxu0 0.0
    %276 = vmatpush.xpose.msra.mxu0 0.0
    %277 = vmatpush.xpose.msra.mxu0 0.0
    %278 = vmatpush.xpose.msra.mxu0 0.0
    %279 = vmatpush.xpose.msra.mxu0 %v262
    %280 = vmatmul.f32.gmra.mxu0 %v250
    %v281 = vpop.f32.mrf.mxu0
    %v282 = vadd.f32 0.0, %v281
    %283 = vmatmul.f32.gmra.mxu0 %v253
    %v284 = vpop.f32.mrf.mxu0
    %v285 = vadd.f32 0.0, %v284
    %286 = vmatmul.f32.gmra.mxu0 %v256
    %v287 = vpop.f32.mrf.mxu0
    %v288 = vadd.f32 0.0, %v287
    %289 = vmatmul.f32.gmra.mxu0 %v259
    %v290 = vpop.f32.mrf.mxu0
    %v291 = vadd.f32 0.0, %v290
    %292 = vdwg.mxu0
    %v293 = vld [vmem:[%s2] sm:$0xff]
    %v294 = vld [vmem:[%s2 + $0x8] sm:$0xff]
    %v295 = vadd.f32 %v238, %v293
    %v296 = vadd.f32 %v241, %v293
    %v297 = vadd.f32 %v244, %v293
    %v298 = vadd.f32 %v247, %v293
    %v299 = vadd.f32 %v282, %v294
    %v300 = vadd.f32 %v285, %v294
    %v301 = vadd.f32 %v288, %v294
    %v302 = vadd.f32 %v291, %v294
    %vm303 = vcmask 64512
    %v304 = vsel %vm303, %v295, -inf
    %305 = vmax.xlane.f32.xlu0 %v304
    %v306 = vpop.xlane.xlu0 %305
    %v307 = vsel %vm303, %v296, -inf
    %308 = vmax.xlane.f32.xlu0 %v307
    %v309 = vpop.xlane.xlu0 %308
    %v310 = vsel %vm303, %v297, -inf
    %311 = vmax.xlane.f32.xlu0 %v310
    %v312 = vpop.xlane.xlu0 %311
    %v313 = vsel %vm303, %v298, -inf
    %314 = vmax.xlane.f32.xlu0 %v313
    %v315 = vpop.xlane.xlu0 %314
    %v316 = vsel %vm303, %v299, -inf
    %317 = vmax.xlane.f32.xlu0 %v316
    %v318 = vpop.xlane.xlu0 %317
    %v319 = vsel %vm303, %v300, -inf
    %320 = vmax.xlane.f32.xlu0 %v319
    %v321 = vpop.xlane.xlu0 %320
    %v322 = vsel %vm303, %v301, -inf
    %323 = vmax.xlane.f32.xlu0 %v322
    %v324 = vpop.xlane.xlu0 %323
    %v325 = vsel %vm303, %v302, -inf
    %326 = vmax.xlane.f32.xlu0 %v325
    %v327 = vpop.xlane.xlu0 %326
    %v328 = vsub.f32 %v295, %v306
    %v329 = vsub.f32 %v296, %v309
    %v330 = vsub.f32 %v297, %v312
    %v331 = vsub.f32 %v298, %v315
    %v332 = vsub.f32 %v299, %v318
    %v333 = vsub.f32 %v300, %v321
    %v334 = vsub.f32 %v301, %v324
    %v335 = vsub.f32 %v302, %v327
    %v336 = vmul.f32 %v328, 1.442695
    %v337 = vpow.pop %v336
    %v338 = vmul.f32 %v329, 1.442695
    %v339 = vpow.pop %v338
    %v340 = vmul.f32 %v330, 1.442695
    %v341 = vpow.pop %v340
    %v342 = vmul.f32 %v331, 1.442695
    %v343 = vpow.pop %v342
    %v344 = vmul.f32 %v332, 1.442695
    %v345 = vpow.pop %v344
    %v346 = vmul.f32 %v333, 1.442695
    %v347 = vpow.pop %v346
    %v348 = vmul.f32 %v334, 1.442695
    %v349 = vpow.pop %v348
    %v350 = vmul.f32 %v335, 1.442695
    %v351 = vpow.pop %v350
    %v352 = vsel %vm303, %v337, 0.0
    %353 = vadd.xlane.f32.xlu0 %v352
    %v354 = vpop.xlane.xlu0 %353
    %v355 = vsel %vm303, %v339, 0.0
    %356 = vadd.xlane.f32.xlu0 %v355
    %v357 = vpop.xlane.xlu0 %356
    %v358 = vsel %vm303, %v341, 0.0
    %359 = vadd.xlane.f32.xlu0 %v358
    %v360 = vpop.xlane.xlu0 %359
    %v361 = vsel %vm303, %v343, 0.0
    %362 = vadd.xlane.f32.xlu0 %v361
    %v363 = vpop.xlane.xlu0 %362
    %v364 = vsel %vm303, %v345, 0.0
    %365 = vadd.xlane.f32.xlu0 %v364
    %v366 = vpop.xlane.xlu0 %365
    %v367 = vsel %vm303, %v347, 0.0
    %368 = vadd.xlane.f32.xlu0 %v367
    %v369 = vpop.xlane.xlu0 %368
    %v370 = vsel %vm303, %v349, 0.0
    %371 = vadd.xlane.f32.xlu0 %v370
    %v372 = vpop.xlane.xlu0 %371
    %v373 = vsel %vm303, %v351, 0.0
    %374 = vadd.xlane.f32.xlu0 %v373
    %v375 = vpop.xlane.xlu0 %374
    %v376 = vrcp.pop %v354
    %v377 = vmul.f32 %v354, %v376
    %v378 = vsub.f32 1.0, %v377
    %v379 = vmul.f32 %v376, %v378
    %v380 = vadd.f32 %v376, %v379
    %vm381 = vweird.f32 %v354
    %vm382 = vweird.f32 %v376
    %vm383 = vmor %vm381, %vm382
    %v384 = vsel %vm383, %v376, %v380
    %v385 = vand.u32 2147483647, %v354
    %vm386 = vcmp.eq.f32.partialorder %v385, 8.507059e+37
    %v387 = vand.u32 %v354, 2147483648
    %v388 = vor.u32 1.1754944e-38, %v387
    %v389 = vsel %vm386, %v388, %v384
    %v390 = vmul.f32 %v337, %v389
    %v391 = vrcp.pop %v357
    %v392 = vmul.f32 %v357, %v391
    %v393 = vsub.f32 1.0, %v392
    %v394 = vmul.f32 %v391, %v393
    %v395 = vadd.f32 %v391, %v394
    %vm396 = vweird.f32 %v357
    %vm397 = vweird.f32 %v391
    %vm398 = vmor %vm396, %vm397
    %v399 = vsel %vm398, %v391, %v395
    %v400 = vand.u32 2147483647, %v357
    %vm401 = vcmp.eq.f32.partialorder %v400, 8.507059e+37
    %v402 = vand.u32 %v357, 2147483648
    %v403 = vor.u32 1.1754944e-38, %v402
    %v404 = vsel %vm401, %v403, %v399
    %v405 = vmul.f32 %v339, %v404
    %v406 = vrcp.pop %v360
    %v407 = vmul.f32 %v360, %v406
    %v408 = vsub.f32 1.0, %v407
    %v409 = vmul.f32 %v406, %v408
    %v410 = vadd.f32 %v406, %v409
    %vm411 = vweird.f32 %v360
    %vm412 = vweird.f32 %v406
    %vm413 = vmor %vm411, %vm412
    %v414 = vsel %vm413, %v406, %v410
    %v415 = vand.u32 2147483647, %v360
    %vm416 = vcmp.eq.f32.partialorder %v415, 8.507059e+37
    %v417 = vand.u32 %v360, 2147483648
    %v418 = vor.u32 1.1754944e-38, %v417
    %v419 = vsel %vm416, %v418, %v414
    %v420 = vmul.f32 %v341, %v419
    %v421 = vrcp.pop %v363
    %v422 = vmul.f32 %v363, %v421
    %v423 = vsub.f32 1.0, %v422
    %v424 = vmul.f32 %v421, %v423
    %v425 = vadd.f32 %v421, %v424
    %vm426 = vweird.f32 %v363
    %vm427 = vweird.f32 %v421
    %vm428 = vmor %vm426, %vm427
    %v429 = vsel %vm428, %v421, %v425
    %v430 = vand.u32 2147483647, %v363
    %vm431 = vcmp.eq.f32.partialorder %v430, 8.507059e+37
    %v432 = vand.u32 %v363, 2147483648
    %v433 = vor.u32 1.1754944e-38, %v432
    %v434 = vsel %vm431, %v433, %v429
    %v435 = vmul.f32 %v343, %v434
    %v436 = vrcp.pop %v366
    %v437 = vmul.f32 %v366, %v436
    %v438 = vsub.f32 1.0, %v437
    %v439 = vmul.f32 %v436, %v438
    %v440 = vadd.f32 %v436, %v439
    %vm441 = vweird.f32 %v366
    %vm442 = vweird.f32 %v436
    %vm443 = vmor %vm441, %vm442
    %v444 = vsel %vm443, %v436, %v440
    %v445 = vand.u32 2147483647, %v366
    %vm446 = vcmp.eq.f32.partialorder %v445, 8.507059e+37
    %v447 = vand.u32 %v366, 2147483648
    %v448 = vor.u32 1.1754944e-38, %v447
    %v449 = vsel %vm446, %v448, %v444
    %v450 = vmul.f32 %v345, %v449
    %v451 = vrcp.pop %v369
    %v452 = vmul.f32 %v369, %v451
    %v453 = vsub.f32 1.0, %v452
    %v454 = vmul.f32 %v451, %v453
    %v455 = vadd.f32 %v451, %v454
    %vm456 = vweird.f32 %v369
    %vm457 = vweird.f32 %v451
    %vm458 = vmor %vm456, %vm457
    %v459 = vsel %vm458, %v451, %v455
    %v460 = vand.u32 2147483647, %v369
    %vm461 = vcmp.eq.f32.partialorder %v460, 8.507059e+37
    %v462 = vand.u32 %v369, 2147483648
    %v463 = vor.u32 1.1754944e-38, %v462
    %v464 = vsel %vm461, %v463, %v459
    %v465 = vmul.f32 %v347, %v464
    %v466 = vrcp.pop %v372
    %v467 = vmul.f32 %v372, %v466
    %v468 = vsub.f32 1.0, %v467
    %v469 = vmul.f32 %v466, %v468
    %v470 = vadd.f32 %v466, %v469
    %vm471 = vweird.f32 %v372
    %vm472 = vweird.f32 %v466
    %vm473 = vmor %vm471, %vm472
    %v474 = vsel %vm473, %v466, %v470
    %v475 = vand.u32 2147483647, %v372
    %vm476 = vcmp.eq.f32.partialorder %v475, 8.507059e+37
    %v477 = vand.u32 %v372, 2147483648
    %v478 = vor.u32 1.1754944e-38, %v477
    %v479 = vsel %vm476, %v478, %v474
    %v480 = vmul.f32 %v349, %v479
    %v481 = vrcp.pop %v375
    %v482 = vmul.f32 %v375, %v481
    %v483 = vsub.f32 1.0, %v482
    %v484 = vmul.f32 %v481, %v483
    %v485 = vadd.f32 %v481, %v484
    %vm486 = vweird.f32 %v375
    %vm487 = vweird.f32 %v481
    %vm488 = vmor %vm486, %vm487
    %v489 = vsel %vm488, %v481, %v485
    %v490 = vand.u32 2147483647, %v375
    %vm491 = vcmp.eq.f32.partialorder %v490, 8.507059e+37
    %v492 = vand.u32 %v375, 2147483648
    %v493 = vor.u32 1.1754944e-38, %v492
    %v494 = vsel %vm491, %v493, %v489
    %v495 = vmul.f32 %v351, %v494
    %v497 = vsel %vm303, %v390, 0
    %v500 = vsel %vm303, %v405, 0
    %v503 = vsel %vm303, %v420, 0
    %v506 = vsel %vm303, %v435, 0
    %508 = vmatpush.msra.mxu0 0.0
    %509 = vmatpush.msra.mxu0 0.0
    %510 = vmatpush.msra.mxu0 0.0
    %511 = vmatpush.msra.mxu0 0.0
    %512 = vmatpush.msra.mxu0 0.0
    %513 = vmatpush.msra.mxu0 0.0
    %514 = vmatpush.msra.mxu0 0.0
    %515 = vmatpush.msra.mxu0 0.0
    %516 = vmatpush.msra.mxu0 0.0
    %517 = vmatpush.msra.mxu0 0.0
    %518 = vmatpush.msra.mxu0 0.0
    %519 = vmatpush.msra.mxu0 0.0
    %520 = vmatpush.msra.mxu0 0.0
    %521 = vmatpush.msra.mxu0 0.0
    %522 = vmatpush.msra.mxu0 0.0
    %523 = vmatpush.msra.mxu0 %v184
    %524 = vmatmul.f32.gmra.mxu0 %v497
    %v525 = vpop.f32.mrf.mxu0
    %v526 = vadd.f32 0.0, %v525
    %527 = vmatmul.f32.gmra.mxu0 %v500
    %v528 = vpop.f32.mrf.mxu0
    %v529 = vadd.f32 0.0, %v528
    %530 = vmatmul.f32.gmra.mxu0 %v503
    %v531 = vpop.f32.mrf.mxu0
    %v532 = vadd.f32 0.0, %v531
    %533 = vmatmul.f32.gmra.mxu0 %v506
    %v534 = vpop.f32.mrf.mxu0
    %v535 = vadd.f32 0.0, %v534
    %536 = vdwg.mxu0
    %v538 = vsel %vm303, %v450, 0
    %v541 = vsel %vm303, %v465, 0
    %v544 = vsel %vm303, %v480, 0
    %v547 = vsel %vm303, %v495, 0
    %549 = vmatpush.msra.mxu0 0.0
    %550 = vmatpush.msra.mxu0 0.0
    %551 = vmatpush.msra.mxu0 0.0
    %552 = vmatpush.msra.mxu0 0.0
    %553 = vmatpush.msra.mxu0 0.0
    %554 = vmatpush.msra.mxu0 0.0
    %555 = vmatpush.msra.mxu0 0.0
    %556 = vmatpush.msra.mxu0 0.0
    %557 = vmatpush.msra.mxu0 0.0
    %558 = vmatpush.msra.mxu0 0.0
    %559 = vmatpush.msra.mxu0 0.0
    %560 = vmatpush.msra.mxu0 0.0
    %561 = vmatpush.msra.mxu0 0.0
    %562 = vmatpush.msra.mxu0 0.0
    %563 = vmatpush.msra.mxu0 0.0
    %564 = vmatpush.msra.mxu0 %v187
    %565 = vmatmul.f32.gmra.mxu0 %v538
    %v566 = vpop.f32.mrf.mxu0
    %v567 = vadd.f32 0.0, %v566
    %568 = vmatmul.f32.gmra.mxu0 %v541
    %v569 = vpop.f32.mrf.mxu0
    %v570 = vadd.f32 0.0, %v569
    %571 = vmatmul.f32.gmra.mxu0 %v544
    %v572 = vpop.f32.mrf.mxu0
    %v573 = vadd.f32 0.0, %v572
    %574 = vmatmul.f32.gmra.mxu0 %v547
    %v575 = vpop.f32.mrf.mxu0
    %v576 = vadd.f32 0.0, %v575
    %577 = vdwg.mxu0
    %v578 = vmul.f32 %v526, %v189
    %v579 = vmul.f32 %v529, %v190
    %v580 = vmul.f32 %v532, %v191
    %v581 = vmul.f32 %v535, %v192
    %v582 = vmul.f32 %v567, %v189
    %v583 = vmul.f32 %v570, %v190
    %v584 = vmul.f32 %v573, %v191
    %v585 = vmul.f32 %v576, %v192
    %v586 = vsel %vm41, %v578, 0.0
    %v587 = vsel %vm41, %v579, 0.0
    %v588 = vadd.f32 %v586, %v587
    %v589 = vsel %vm41, %v580, 0.0
    %v590 = vadd.f32 %v588, %v589
    %v591 = vsel %vm41, %v581, 0.0
    %v592 = vadd.f32 %v590, %v591
    %v593 = vsel %vm41, %v582, 0.0
    %v594 = vsel %vm41, %v583, 0.0
    %v595 = vadd.f32 %v593, %v594
    %v596 = vsel %vm41, %v584, 0.0
    %v597 = vadd.f32 %v595, %v596
    %v598 = vsel %vm41, %v585, 0.0
    %v599 = vadd.f32 %v597, %v598
    %v600 = vld [vmem:[%s4 + $0x60] sm:$0xff]
    %v601 = vld [vmem:[%s4 + $0x68] sm:$0xff]
    %v602 = vld [vmem:[%s4 + $0x70] sm:$0xff]
    %v603 = vld [vmem:[%s4 + $0x78] sm:$0xff]
    %v604 = vperm.slane %v25, 7
    %v606 = vsel %vm41, %v592, 0
    %v609 = vsel %vm41, %v599, 0
    %611 = vmatpush.msra.mxu0 0.0
    %612 = vmatpush.msra.mxu0 0.0
    %613 = vmatpush.msra.mxu0 0.0
    %614 = vmatpush.msra.mxu0 0.0
    %615 = vmatpush.msra.mxu0 0.0
    %616 = vmatpush.msra.mxu0 0.0
    %617 = vmatpush.msra.mxu0 0.0
    %618 = vmatpush.msra.mxu0 0.0
    %619 = vmatpush.msra.mxu0 0.0
    %620 = vmatpush.msra.mxu0 0.0
    %621 = vmatpush.msra.mxu0 0.0
    %622 = vmatpush.msra.mxu0 0.0
    %623 = vmatpush.msra.mxu0 %v603
    %624 = vmatpush.msra.mxu0 %v602
    %625 = vmatpush.msra.mxu0 %v601
    %626 = vmatpush.msra.mxu0 %v600
    %627 = vmatmul.f32.gmra.mxu0 %v606
    %v628 = vpop.f32.mrf.mxu0
    %v629 = vadd.f32 %v604, %v628
    %630 = vmatmul.f32.gmra.mxu0 %v609
    %v631 = vpop.f32.mrf.mxu0
    %v632 = vadd.f32 %v604, %v631
    %633 = vdwg.mxu0
    %v634 = vadd.f32 %v39, %v629
    %v635 = vadd.f32 %v40, %v632
    %v636 = vsel %vm41, %v634, 0.0
    %637 = vadd.xlane.f32.xlu0 %v636
    %v638 = vpop.xlane.xlu0 %637
    %v639 = vsel %vm41, %v635, 0.0
    %640 = vadd.xlane.f32.xlu0 %v639
    %v641 = vpop.xlane.xlu0 %640
    %v642 = vmul.f32 %v638, %v54
    %v643 = vmul.f32 %v641, %v54
    %v644 = vsub.f32 %v634, %v642
    %v645 = vsub.f32 %v635, %v643
    %v646 = vmul.f32 %v644, %v644
    %v647 = vmul.f32 %v645, %v645
    %v648 = vsel %vm41, %v646, 0.0
    %649 = vadd.xlane.f32.xlu0 %v648
    %v650 = vpop.xlane.xlu0 %649
    %v651 = vsel %vm41, %v647, 0.0
    %652 = vadd.xlane.f32.xlu0 %v651
    %v653 = vpop.xlane.xlu0 %652
    %v654 = vmul.f32 %v650, %v54
    %v655 = vmul.f32 %v653, %v54
    %v656 = vadd.f32 %v654, 1e-05
    %v657 = vadd.f32 %v655, 1e-05
    %v658 = vrsqrt.pop %v656
    %v659 = vmul.f32 %v658, %v656
    %v660 = vmul.f32 %v659, %v658
    %v661 = vmul.f32 0.5, %v660
    %v662 = vsub.f32 1.5, %v661
    %v663 = vmul.f32 %v658, %v662
    %vm664 = vweird.f32 %v656
    %vm665 = vweird.f32 %v658
    %vm666 = vmor %vm664, %vm665
    %v667 = vsel %vm666, %v658, %v663
    %v668 = vrsqrt.pop %v657
    %v669 = vmul.f32 %v668, %v657
    %v670 = vmul.f32 %v669, %v668
    %v671 = vmul.f32 0.5, %v670
    %v672 = vsub.f32 1.5, %v671
    %v673 = vmul.f32 %v668, %v672
    %vm674 = vweird.f32 %v657
    %vm675 = vweird.f32 %v668
    %vm676 = vmor %vm674, %vm675
    %v677 = vsel %vm676, %v668, %v673
    %v678 = vmul.f32 %v644, %v667
    %v679 = vmul.f32 %v645, %v677
    %v680 = vperm.slane %v24, 1
    %v681 = vmul.f32 %v678, %v680
    %v682 = vmul.f32 %v679, %v680
    %v683 = vperm.slane %v24, 7
    %v684 = vadd.f32 %v681, %v683
    %v685 = vadd.f32 %v682, %v683
    %v686 = vld [vmem:[%s1] sm:$0xff]
    %v687 = vld [vmem:[%s1 + $0x8] sm:$0xff]
    %v688 = vld [vmem:[%s1 + $0x10] sm:$0xff]
    %v689 = vld [vmem:[%s1 + $0x18] sm:$0xff]
    %v690 = vld [vmem:[%s1 + $0x20] sm:$0xff]
    %v691 = vld [vmem:[%s1 + $0x28] sm:$0xff]
    %v692 = vld [vmem:[%s1 + $0x30] sm:$0xff]
    %v693 = vld [vmem:[%s1 + $0x38] sm:$0xff]
    %v694 = vld [vmem:[%s1 + $0x40] sm:$0xff]
    %v695 = vld [vmem:[%s1 + $0x48] sm:$0xff]
    %v696 = vld [vmem:[%s1 + $0x50] sm:$0xff]
    %v697 = vld [vmem:[%s1 + $0x58] sm:$0xff]
    %v698 = vsel %vm41, %v686, 0.0
    %699 = vadd.xlane.f32.xlu0 %v698
    %v700 = vpop.xlane.xlu0 %699
    %v701 = vsel %vm41, %v687, 0.0
    %702 = vadd.xlane.f32.xlu0 %v701
    %v703 = vpop.xlane.xlu0 %702
    %v704 = vsel %vm41, %v688, 0.0
    %705 = vadd.xlane.f32.xlu0 %v704
    %v706 = vpop.xlane.xlu0 %705
    %v707 = vsel %vm41, %v689, 0.0
    %708 = vadd.xlane.f32.xlu0 %v707
    %v709 = vpop.xlane.xlu0 %708
    %v710 = vsel %vm41, %v690, 0.0
    %711 = vadd.xlane.f32.xlu0 %v710
    %v712 = vpop.xlane.xlu0 %711
    %v713 = vsel %vm41, %v691, 0.0
    %714 = vadd.xlane.f32.xlu0 %v713
    %v715 = vpop.xlane.xlu0 %714
    %v716 = vsel %vm41, %v692, 0.0
    %717 = vadd.xlane.f32.xlu0 %v716
    %v718 = vpop.xlane.xlu0 %717
    %v719 = vsel %vm41, %v693, 0.0
    %720 = vadd.xlane.f32.xlu0 %v719
    %v721 = vpop.xlane.xlu0 %720
    %v722 = vsel %vm41, %v694, 0.0
    %723 = vadd.xlane.f32.xlu0 %v722
    %v724 = vpop.xlane.xlu0 %723
    %v725 = vsel %vm41, %v695, 0.0
    %726 = vadd.xlane.f32.xlu0 %v725
    %v727 = vpop.xlane.xlu0 %726
    %v728 = vsel %vm41, %v696, 0.0
    %729 = vadd.xlane.f32.xlu0 %v728
    %v730 = vpop.xlane.xlu0 %729
    %v731 = vsel %vm41, %v697, 0.0
    %732 = vadd.xlane.f32.xlu0 %v731
    %v733 = vpop.xlane.xlu0 %732
    %v734 = vmul.f32 %v700, %v54
    %v735 = vmul.f32 %v703, %v54
    %v736 = vmul.f32 %v706, %v54
    %v737 = vmul.f32 %v709, %v54
    %v738 = vmul.f32 %v712, %v54
    %v739 = vmul.f32 %v715, %v54
    %v740 = vmul.f32 %v718, %v54
    %v741 = vmul.f32 %v721, %v54
    %v742 = vmul.f32 %v724, %v54
    %v743 = vmul.f32 %v727, %v54
    %v744 = vmul.f32 %v730, %v54
    %v745 = vmul.f32 %v733, %v54
    %v746 = vsub.f32 %v686, %v734
    %v747 = vsub.f32 %v687, %v735
    %v748 = vsub.f32 %v688, %v736
    %v749 = vsub.f32 %v689, %v737
    %v750 = vsub.f32 %v690, %v738
    %v751 = vsub.f32 %v691, %v739
    %v752 = vsub.f32 %v692, %v740
    %v753 = vsub.f32 %v693, %v741
    %v754 = vsub.f32 %v694, %v742
    %v755 = vsub.f32 %v695, %v743
    %v756 = vsub.f32 %v696, %v744
    %v757 = vsub.f32 %v697, %v745
    %v758 = vmul.f32 %v746, %v746
    %v759 = vmul.f32 %v747, %v747
    %v760 = vmul.f32 %v748, %v748
    %v761 = vmul.f32 %v749, %v749
    %v762 = vmul.f32 %v750, %v750
    %v763 = vmul.f32 %v751, %v751
    %v764 = vmul.f32 %v752, %v752
    %v765 = vmul.f32 %v753, %v753
    %v766 = vmul.f32 %v754, %v754
    %v767 = vmul.f32 %v755, %v755
    %v768 = vmul.f32 %v756, %v756
    %v769 = vmul.f32 %v757, %v757
    %v770 = vsel %vm41, %v758, 0.0
    %771 = vadd.xlane.f32.xlu0 %v770
    %v772 = vpop.xlane.xlu0 %771
    %v773 = vsel %vm41, %v759, 0.0
    %774 = vadd.xlane.f32.xlu0 %v773
    %v775 = vpop.xlane.xlu0 %774
    %v776 = vsel %vm41, %v760, 0.0
    %777 = vadd.xlane.f32.xlu0 %v776
    %v778 = vpop.xlane.xlu0 %777
    %v779 = vsel %vm41, %v761, 0.0
    %780 = vadd.xlane.f32.xlu0 %v779
    %v781 = vpop.xlane.xlu0 %780
    %v782 = vsel %vm41, %v762, 0.0
    %783 = vadd.xlane.f32.xlu0 %v782
    %v784 = vpop.xlane.xlu0 %783
    %v785 = vsel %vm41, %v763, 0.0
    %786 = vadd.xlane.f32.xlu0 %v785
    %v787 = vpop.xlane.xlu0 %786
    %v788 = vsel %vm41, %v764, 0.0
    %789 = vadd.xlane.f32.xlu0 %v788
    %v790 = vpop.xlane.xlu0 %789
    %v791 = vsel %vm41, %v765, 0.0
    %792 = vadd.xlane.f32.xlu0 %v791
    %v793 = vpop.xlane.xlu0 %792
    %v794 = vsel %vm41, %v766, 0.0
    %795 = vadd.xlane.f32.xlu0 %v794
    %v796 = vpop.xlane.xlu0 %795
    %v797 = vsel %vm41, %v767, 0.0
    %798 = vadd.xlane.f32.xlu0 %v797
    %v799 = vpop.xlane.xlu0 %798
    %v800 = vsel %vm41, %v768, 0.0
    %801 = vadd.xlane.f32.xlu0 %v800
    %v802 = vpop.xlane.xlu0 %801
    %v803 = vsel %vm41, %v769, 0.0
    %804 = vadd.xlane.f32.xlu0 %v803
    %v805 = vpop.xlane.xlu0 %804
    %v806 = vmul.f32 %v772, %v54
    %v807 = vmul.f32 %v775, %v54
    %v808 = vmul.f32 %v778, %v54
    %v809 = vmul.f32 %v781, %v54
    %v810 = vmul.f32 %v784, %v54
    %v811 = vmul.f32 %v787, %v54
    %v812 = vmul.f32 %v790, %v54
    %v813 = vmul.f32 %v793, %v54
    %v814 = vmul.f32 %v796, %v54
    %v815 = vmul.f32 %v799, %v54
    %v816 = vmul.f32 %v802, %v54
    %v817 = vmul.f32 %v805, %v54
    %v818 = vadd.f32 %v806, 1e-05
    %v819 = vadd.f32 %v807, 1e-05
    %v820 = vadd.f32 %v808, 1e-05
    %v821 = vadd.f32 %v809, 1e-05
    %v822 = vadd.f32 %v810, 1e-05
    %v823 = vadd.f32 %v811, 1e-05
    %v824 = vadd.f32 %v812, 1e-05
    %v825 = vadd.f32 %v813, 1e-05
    %v826 = vadd.f32 %v814, 1e-05
    %v827 = vadd.f32 %v815, 1e-05
    %v828 = vadd.f32 %v816, 1e-05
    %v829 = vadd.f32 %v817, 1e-05
    %v830 = vrsqrt.pop %v818
    %v831 = vmul.f32 %v830, %v818
    %v832 = vmul.f32 %v831, %v830
    %v833 = vmul.f32 0.5, %v832
    %v834 = vsub.f32 1.5, %v833
    %v835 = vmul.f32 %v830, %v834
    %vm836 = vweird.f32 %v818
    %vm837 = vweird.f32 %v830
    %vm838 = vmor %vm836, %vm837
    %v839 = vsel %vm838, %v830, %v835
    %v840 = vrsqrt.pop %v819
    %v841 = vmul.f32 %v840, %v819
    %v842 = vmul.f32 %v841, %v840
    %v843 = vmul.f32 0.5, %v842
    %v844 = vsub.f32 1.5, %v843
    %v845 = vmul.f32 %v840, %v844
    %vm846 = vweird.f32 %v819
    %vm847 = vweird.f32 %v840
    %vm848 = vmor %vm846, %vm847
    %v849 = vsel %vm848, %v840, %v845
    %v850 = vrsqrt.pop %v820
    %v851 = vmul.f32 %v850, %v820
    %v852 = vmul.f32 %v851, %v850
    %v853 = vmul.f32 0.5, %v852
    %v854 = vsub.f32 1.5, %v853
    %v855 = vmul.f32 %v850, %v854
    %vm856 = vweird.f32 %v820
    %vm857 = vweird.f32 %v850
    %vm858 = vmor %vm856, %vm857
    %v859 = vsel %vm858, %v850, %v855
    %v860 = vrsqrt.pop %v821
    %v861 = vmul.f32 %v860, %v821
    %v862 = vmul.f32 %v861, %v860
    %v863 = vmul.f32 0.5, %v862
    %v864 = vsub.f32 1.5, %v863
    %v865 = vmul.f32 %v860, %v864
    %vm866 = vweird.f32 %v821
    %vm867 = vweird.f32 %v860
    %vm868 = vmor %vm866, %vm867
    %v869 = vsel %vm868, %v860, %v865
    %v870 = vrsqrt.pop %v822
    %v871 = vmul.f32 %v870, %v822
    %v872 = vmul.f32 %v871, %v870
    %v873 = vmul.f32 0.5, %v872
    %v874 = vsub.f32 1.5, %v873
    %v875 = vmul.f32 %v870, %v874
    %vm876 = vweird.f32 %v822
    %vm877 = vweird.f32 %v870
    %vm878 = vmor %vm876, %vm877
    %v879 = vsel %vm878, %v870, %v875
    %v880 = vrsqrt.pop %v823
    %v881 = vmul.f32 %v880, %v823
    %v882 = vmul.f32 %v881, %v880
    %v883 = vmul.f32 0.5, %v882
    %v884 = vsub.f32 1.5, %v883
    %v885 = vmul.f32 %v880, %v884
    %vm886 = vweird.f32 %v823
    %vm887 = vweird.f32 %v880
    %vm888 = vmor %vm886, %vm887
    %v889 = vsel %vm888, %v880, %v885
    %v890 = vrsqrt.pop %v824
    %v891 = vmul.f32 %v890, %v824
    %v892 = vmul.f32 %v891, %v890
    %v893 = vmul.f32 0.5, %v892
    %v894 = vsub.f32 1.5, %v893
    %v895 = vmul.f32 %v890, %v894
    %vm896 = vweird.f32 %v824
    %vm897 = vweird.f32 %v890
    %vm898 = vmor %vm896, %vm897
    %v899 = vsel %vm898, %v890, %v895
    %v900 = vrsqrt.pop %v825
    %v901 = vmul.f32 %v900, %v825
    %v902 = vmul.f32 %v901, %v900
    %v903 = vmul.f32 0.5, %v902
    %v904 = vsub.f32 1.5, %v903
    %v905 = vmul.f32 %v900, %v904
    %vm906 = vweird.f32 %v825
    %vm907 = vweird.f32 %v900
    %vm908 = vmor %vm906, %vm907
    %v909 = vsel %vm908, %v900, %v905
    %v910 = vrsqrt.pop %v826
    %v911 = vmul.f32 %v910, %v826
    %v912 = vmul.f32 %v911, %v910
    %v913 = vmul.f32 0.5, %v912
    %v914 = vsub.f32 1.5, %v913
    %v915 = vmul.f32 %v910, %v914
    %vm916 = vweird.f32 %v826
    %vm917 = vweird.f32 %v910
    %vm918 = vmor %vm916, %vm917
    %v919 = vsel %vm918, %v910, %v915
    %v920 = vrsqrt.pop %v827
    %v921 = vmul.f32 %v920, %v827
    %v922 = vmul.f32 %v921, %v920
    %v923 = vmul.f32 0.5, %v922
    %v924 = vsub.f32 1.5, %v923
    %v925 = vmul.f32 %v920, %v924
    %vm926 = vweird.f32 %v827
    %vm927 = vweird.f32 %v920
    %vm928 = vmor %vm926, %vm927
    %v929 = vsel %vm928, %v920, %v925
    %v930 = vrsqrt.pop %v828
    %v931 = vmul.f32 %v930, %v828
    %v932 = vmul.f32 %v931, %v930
    %v933 = vmul.f32 0.5, %v932
    %v934 = vsub.f32 1.5, %v933
    %v935 = vmul.f32 %v930, %v934
    %vm936 = vweird.f32 %v828
    %vm937 = vweird.f32 %v930
    %vm938 = vmor %vm936, %vm937
    %v939 = vsel %vm938, %v930, %v935
    %v940 = vrsqrt.pop %v829
    %v941 = vmul.f32 %v940, %v829
    %v942 = vmul.f32 %v941, %v940
    %v943 = vmul.f32 0.5, %v942
    %v944 = vsub.f32 1.5, %v943
    %v945 = vmul.f32 %v940, %v944
    %vm946 = vweird.f32 %v829
    %vm947 = vweird.f32 %v940
    %vm948 = vmor %vm946, %vm947
    %v949 = vsel %vm948, %v940, %v945
    %v950 = vmul.f32 %v746, %v839
    %v951 = vmul.f32 %v747, %v849
    %v952 = vmul.f32 %v748, %v859
    %v953 = vmul.f32 %v749, %v869
    %v954 = vmul.f32 %v750, %v879
    %v955 = vmul.f32 %v751, %v889
    %v956 = vmul.f32 %v752, %v899
    %v957 = vmul.f32 %v753, %v909
    %v958 = vmul.f32 %v754, %v919
    %v959 = vmul.f32 %v755, %v929
    %v960 = vmul.f32 %v756, %v939
    %v961 = vmul.f32 %v757, %v949
    %v962 = vperm.slane %v24, 2
    %v963 = vmul.f32 %v950, %v962
    %v964 = vmul.f32 %v951, %v962
    %v965 = vmul.f32 %v952, %v962
    %v966 = vmul.f32 %v953, %v962
    %v967 = vmul.f32 %v954, %v962
    %v968 = vmul.f32 %v955, %v962
    %v969 = vmul.f32 %v956, %v962
    %v970 = vmul.f32 %v957, %v962
    %v971 = vmul.f32 %v958, %v962
    %v972 = vmul.f32 %v959, %v962
    %v973 = vmul.f32 %v960, %v962
    %v974 = vmul.f32 %v961, %v962
    %v975 = vperm.slane %v25, 0
    %v976 = vadd.f32 %v963, %v975
    %v977 = vadd.f32 %v964, %v975
    %v978 = vadd.f32 %v965, %v975
    %v979 = vadd.f32 %v966, %v975
    %v980 = vadd.f32 %v967, %v975
    %v981 = vadd.f32 %v968, %v975
    %v982 = vadd.f32 %v969, %v975
    %v983 = vadd.f32 %v970, %v975
    %v984 = vadd.f32 %v971, %v975
    %v985 = vadd.f32 %v972, %v975
    %v986 = vadd.f32 %v973, %v975
    %v987 = vadd.f32 %v974, %v975
    %v988 = vld [vmem:[%s4 + $0x80] sm:$0xff]
    %v989 = vld [vmem:[%s4 + $0x88] sm:$0xff]
    %v990 = vld [vmem:[%s4 + $0x90] sm:$0xff]
    %v991 = vld [vmem:[%s4 + $0x98] sm:$0xff]
    %v992 = vperm.slane %v26, 0
    %v994 = vsel %vm41, %v684, 0
    %v997 = vsel %vm41, %v685, 0
    %999 = vmatpush.msra.mxu0 0.0
    %1000 = vmatpush.msra.mxu0 0.0
    %1001 = vmatpush.msra.mxu0 0.0
    %1002 = vmatpush.msra.mxu0 0.0
    %1003 = vmatpush.msra.mxu0 0.0
    %1004 = vmatpush.msra.mxu0 0.0
    %1005 = vmatpush.msra.mxu0 0.0
    %1006 = vmatpush.msra.mxu0 0.0
    %1007 = vmatpush.msra.mxu0 0.0
    %1008 = vmatpush.msra.mxu0 0.0
    %1009 = vmatpush.msra.mxu0 0.0
    %1010 = vmatpush.msra.mxu0 0.0
    %1011 = vmatpush.msra.mxu0 %v991
    %1012 = vmatpush.msra.mxu0 %v990
    %1013 = vmatpush.msra.mxu0 %v989
    %1014 = vmatpush.msra.mxu0 %v988
    %1015 = vmatmul.f32.gmra.mxu0 %v994
    %v1016 = vpop.f32.mrf.mxu0
    %v1017 = vadd.f32 %v992, %v1016
    %1018 = vmatmul.f32.gmra.mxu0 %v997
    %v1019 = vpop.f32.mrf.mxu0
    %v1020 = vadd.f32 %v992, %v1019
    %1021 = vdwg.mxu0
    %v1022 = vld [vmem:[%s4 + $0xa0] sm:$0xff]
    %v1023 = vld [vmem:[%s4 + $0xa8] sm:$0xff]
    %v1024 = vld [vmem:[%s4 + $0xb0] sm:$0xff]
    %v1025 = vld [vmem:[%s4 + $0xb8] sm:$0xff]
    %v1026 = vperm.slane %v26, 1
    %v1028 = vsel %vm41, %v976, 0
    %v1031 = vsel %vm41, %v977, 0
    %v1034 = vsel %vm41, %v978, 0
    %v1037 = vsel %vm41, %v979, 0
    %v1040 = vsel %vm41, %v980, 0
    %v1043 = vsel %vm41, %v981, 0
    %v1046 = vsel %vm41, %v982, 0
    %v1049 = vsel %vm41, %v983, 0
    %v1052 = vsel %vm41, %v984, 0
    %v1055 = vsel %vm41, %v985, 0
    %v1058 = vsel %vm41, %v986, 0
    %v1061 = vsel %vm41, %v987, 0
    %1063 = vmatpush.msra.mxu0 0.0
    %1064 = vmatpush.msra.mxu0 0.0
    %1065 = vmatpush.msra.mxu0 0.0
    %1066 = vmatpush.msra.mxu0 0.0
    %1067 = vmatpush.msra.mxu0 0.0
    %1068 = vmatpush.msra.mxu0 0.0
    %1069 = vmatpush.msra.mxu0 0.0
    %1070 = vmatpush.msra.mxu0 0.0
    %1071 = vmatpush.msra.mxu0 0.0
    %1072 = vmatpush.msra.mxu0 0.0
    %1073 = vmatpush.msra.mxu0 0.0
    %1074 = vmatpush.msra.mxu0 0.0
    %1075 = vmatpush.msra.mxu0 %v1025
    %1076 = vmatpush.msra.mxu0 %v1024
    %1077 = vmatpush.msra.mxu0 %v1023
    %1078 = vmatpush.msra.mxu0 %v1022
    %1079 = vmatmul.f32.gmra.mxu0 %v1028
    %v1080 = vpop.f32.mrf.mxu0
    %v1081 = vadd.f32 %v1026, %v1080
    %1082 = vmatmul.f32.gmra.mxu0 %v1031
    %v1083 = vpop.f32.mrf.mxu0
    %v1084 = vadd.f32 %v1026, %v1083
    %1085 = vmatmul.f32.gmra.mxu0 %v1034
    %v1086 = vpop.f32.mrf.mxu0
    %v1087 = vadd.f32 %v1026, %v1086
    %1088 = vmatmul.f32.gmra.mxu0 %v1037
    %v1089 = vpop.f32.mrf.mxu0
    %v1090 = vadd.f32 %v1026, %v1089
    %1091 = vmatmul.f32.gmra.mxu0 %v1040
    %v1092 = vpop.f32.mrf.mxu0
    %v1093 = vadd.f32 %v1026, %v1092
    %1094 = vmatmul.f32.gmra.mxu0 %v1043
    %v1095 = vpop.f32.mrf.mxu0
    %v1096 = vadd.f32 %v1026, %v1095
    %1097 = vmatmul.f32.gmra.mxu0 %v1046
    %v1098 = vpop.f32.mrf.mxu0
    %v1099 = vadd.f32 %v1026, %v1098
    %1100 = vmatmul.f32.gmra.mxu0 %v1049
    %v1101 = vpop.f32.mrf.mxu0
    %v1102 = vadd.f32 %v1026, %v1101
    %1103 = vmatmul.f32.gmra.mxu0 %v1052
    %v1104 = vpop.f32.mrf.mxu0
    %v1105 = vadd.f32 %v1026, %v1104
    %1106 = vmatmul.f32.gmra.mxu0 %v1055
    %v1107 = vpop.f32.mrf.mxu0
    %v1108 = vadd.f32 %v1026, %v1107
    %1109 = vmatmul.f32.gmra.mxu0 %v1058
    %v1110 = vpop.f32.mrf.mxu0
    %v1111 = vadd.f32 %v1026, %v1110
    %1112 = vmatmul.f32.gmra.mxu0 %v1061
    %v1113 = vpop.f32.mrf.mxu0
    %v1114 = vadd.f32 %v1026, %v1113
    %1115 = vdwg.mxu0
    %v1116 = vld [vmem:[%s4 + $0xc0] sm:$0xff]
    %v1117 = vld [vmem:[%s4 + $0xc8] sm:$0xff]
    %v1118 = vld [vmem:[%s4 + $0xd0] sm:$0xff]
    %v1119 = vld [vmem:[%s4 + $0xd8] sm:$0xff]
    %v1120 = vperm.slane %v26, 2
    %1121 = vmatpush.msra.mxu0 0.0
    %1122 = vmatpush.msra.mxu0 0.0
    %1123 = vmatpush.msra.mxu0 0.0
    %1124 = vmatpush.msra.mxu0 0.0
    %1125 = vmatpush.msra.mxu0 0.0
    %1126 = vmatpush.msra.mxu0 0.0
    %1127 = vmatpush.msra.mxu0 0.0
    %1128 = vmatpush.msra.mxu0 0.0
    %1129 = vmatpush.msra.mxu0 0.0
    %1130 = vmatpush.msra.mxu0 0.0
    %1131 = vmatpush.msra.mxu0 0.0
    %1132 = vmatpush.msra.mxu0 0.0
    %1133 = vmatpush.msra.mxu0 %v1119
    %1134 = vmatpush.msra.mxu0 %v1118
    %1135 = vmatpush.msra.mxu0 %v1117
    %1136 = vmatpush.msra.mxu0 %v1116
    %1137 = vmatmul.f32.gmra.mxu0 %v1028
    %v1138 = vpop.f32.mrf.mxu0
    %v1139 = vadd.f32 %v1120, %v1138
    %1140 = vmatmul.f32.gmra.mxu0 %v1031
    %v1141 = vpop.f32.mrf.mxu0
    %v1142 = vadd.f32 %v1120, %v1141
    %1143 = vmatmul.f32.gmra.mxu0 %v1034
    %v1144 = vpop.f32.mrf.mxu0
    %v1145 = vadd.f32 %v1120, %v1144
    %1146 = vmatmul.f32.gmra.mxu0 %v1037
    %v1147 = vpop.f32.mrf.mxu0
    %v1148 = vadd.f32 %v1120, %v1147
    %1149 = vmatmul.f32.gmra.mxu0 %v1040
    %v1150 = vpop.f32.mrf.mxu0
    %v1151 = vadd.f32 %v1120, %v1150
    %1152 = vmatmul.f32.gmra.mxu0 %v1043
    %v1153 = vpop.f32.mrf.mxu0
    %v1154 = vadd.f32 %v1120, %v1153
    %1155 = vmatmul.f32.gmra.mxu0 %v1046
    %v1156 = vpop.f32.mrf.mxu0
    %v1157 = vadd.f32 %v1120, %v1156
    %1158 = vmatmul.f32.gmra.mxu0 %v1049
    %v1159 = vpop.f32.mrf.mxu0
    %v1160 = vadd.f32 %v1120, %v1159
    %1161 = vmatmul.f32.gmra.mxu0 %v1052
    %v1162 = vpop.f32.mrf.mxu0
    %v1163 = vadd.f32 %v1120, %v1162
    %1164 = vmatmul.f32.gmra.mxu0 %v1055
    %v1165 = vpop.f32.mrf.mxu0
    %v1166 = vadd.f32 %v1120, %v1165
    %1167 = vmatmul.f32.gmra.mxu0 %v1058
    %v1168 = vpop.f32.mrf.mxu0
    %v1169 = vadd.f32 %v1120, %v1168
    %1170 = vmatmul.f32.gmra.mxu0 %v1061
    %v1171 = vpop.f32.mrf.mxu0
    %v1172 = vadd.f32 %v1120, %v1171
    %1173 = vdwg.mxu0
    %v1174 = vmul.f32 %v1017, %v189
    %v1175 = vmul.f32 %v1017, %v190
    %v1176 = vmul.f32 %v1017, %v191
    %v1177 = vmul.f32 %v1017, %v192
    %v1178 = vmul.f32 %v1020, %v189
    %v1179 = vmul.f32 %v1020, %v190
    %v1180 = vmul.f32 %v1020, %v191
    %v1181 = vmul.f32 %v1020, %v192
    %v1183 = vsel %vm41, %v1174, 0
    %v1186 = vsel %vm41, %v1175, 0
    %v1189 = vsel %vm41, %v1176, 0
    %v1192 = vsel %vm41, %v1177, 0
    %v1195 = vsel %vm41, %v1081, 0
    %v1198 = vsel %vm41, %v1084, 0
    %v1201 = vsel %vm41, %v1087, 0
    %v1204 = vsel %vm41, %v1090, 0
    %v1207 = vsel %vm41, %v1093, 0
    %v1210 = vsel %vm41, %v1096, 0
    %1212 = vmatpush.xpose.msra.mxu0 0.0
    %1213 = vmatpush.xpose.msra.mxu0 0.0
    %1214 = vmatpush.xpose.msra.mxu0 0.0
    %1215 = vmatpush.xpose.msra.mxu0 0.0
    %1216 = vmatpush.xpose.msra.mxu0 0.0
    %1217 = vmatpush.xpose.msra.mxu0 0.0
    %1218 = vmatpush.xpose.msra.mxu0 0.0
    %1219 = vmatpush.xpose.msra.mxu0 0.0
    %1220 = vmatpush.xpose.msra.mxu0 0.0
    %1221 = vmatpush.xpose.msra.mxu0 0.0
    %1222 = vmatpush.xpose.msra.mxu0 %v1210
    %1223 = vmatpush.xpose.msra.mxu0 %v1207
    %1224 = vmatpush.xpose.msra.mxu0 %v1204
    %1225 = vmatpush.xpose.msra.mxu0 %v1201
    %1226 = vmatpush.xpose.msra.mxu0 %v1198
    %1227 = vmatpush.xpose.msra.mxu0 %v1195
    %1228 = vmatmul.f32.gmra.mxu0 %v1183
    %v1229 = vpop.f32.mrf.mxu0
    %v1230 = vadd.f32 0.0, %v1229
    %1231 = vmatmul.f32.gmra.mxu0 %v1186
    %v1232 = vpop.f32.mrf.mxu0
    %v1233 = vadd.f32 0.0, %v1232
    %1234 = vmatmul.f32.gmra.mxu0 %v1189
    %v1235 = vpop.f32.mrf.mxu0
    %v1236 = vadd.f32 0.0, %v1235
    %1237 = vmatmul.f32.gmra.mxu0 %v1192
    %v1238 = vpop.f32.mrf.mxu0
    %v1239 = vadd.f32 0.0, %v1238
    %1240 = vdwg.mxu0
    %v1242 = vsel %vm41, %v1178, 0
    %v1245 = vsel %vm41, %v1179, 0
    %v1248 = vsel %vm41, %v1180, 0
    %v1251 = vsel %vm41, %v1181, 0
    %v1254 = vsel %vm41, %v1099, 0
    %v1257 = vsel %vm41, %v1102, 0
    %v1260 = vsel %vm41, %v1105, 0
    %v1263 = vsel %vm41, %v1108, 0
    %v1266 = vsel %vm41, %v1111, 0
    %v1269 = vsel %vm41, %v1114, 0
    %1271 = vmatpush.xpose.msra.mxu0 0.0
    %1272 = vmatpush.xpose.msra.mxu0 0.0
    %1273 = vmatpush.xpose.msra.mxu0 0.0
    %1274 = vmatpush.xpose.msra.mxu0 0.0
    %1275 = vmatpush.xpose.msra.mxu0 0.0
    %1276 = vmatpush.xpose.msra.mxu0 0.0
    %1277 = vmatpush.xpose.msra.mxu0 0.0
    %1278 = vmatpush.xpose.msra.mxu0 0.0
    %1279 = vmatpush.xpose.msra.mxu0 0.0
    %1280 = vmatpush.xpose.msra.mxu0 0.0
    %1281 = vmatpush.xpose.msra.mxu0 %v1269
    %1282 = vmatpush.xpose.msra.mxu0 %v1266
    %1283 = vmatpush.xpose.msra.mxu0 %v1263
    %1284 = vmatpush.xpose.msra.mxu0 %v1260
    %1285 = vmatpush.xpose.msra.mxu0 %v1257
    %1286 = vmatpush.xpose.msra.mxu0 %v1254
    %1287 = vmatmul.f32.gmra.mxu0 %v1242
    %v1288 = vpop.f32.mrf.mxu0
    %v1289 = vadd.f32 0.0, %v1288
    %1290 = vmatmul.f32.gmra.mxu0 %v1245
    %v1291 = vpop.f32.mrf.mxu0
    %v1292 = vadd.f32 0.0, %v1291
    %1293 = vmatmul.f32.gmra.mxu0 %v1248
    %v1294 = vpop.f32.mrf.mxu0
    %v1295 = vadd.f32 0.0, %v1294
    %1296 = vmatmul.f32.gmra.mxu0 %v1251
    %v1297 = vpop.f32.mrf.mxu0
    %v1298 = vadd.f32 0.0, %v1297
    %1299 = vdwg.mxu0
    %v1300 = vxor.u32 %v1230, 2147483648
    %v1301 = vxor.u32 %v1233, 2147483648
    %v1302 = vxor.u32 %v1236, 2147483648
    %v1303 = vxor.u32 %v1239, 2147483648
    %v1304 = vxor.u32 %v1289, 2147483648
    %v1305 = vxor.u32 %v1292, 2147483648
    %v1306 = vxor.u32 %v1295, 2147483648
    %v1307 = vxor.u32 %v1298, 2147483648
    %v1308 = vmul.f32 %v1300, 1.442695
    %v1309 = vpow.pop %v1308
    %v1310 = vmul.f32 %v1301, 1.442695
    %v1311 = vpow.pop %v1310
    %v1312 = vmul.f32 %v1302, 1.442695
    %v1313 = vpow.pop %v1312
    %v1314 = vmul.f32 %v1303, 1.442695
    %v1315 = vpow.pop %v1314
    %v1316 = vmul.f32 %v1304, 1.442695
    %v1317 = vpow.pop %v1316
    %v1318 = vmul.f32 %v1305, 1.442695
    %v1319 = vpow.pop %v1318
    %v1320 = vmul.f32 %v1306, 1.442695
    %v1321 = vpow.pop %v1320
    %v1322 = vmul.f32 %v1307, 1.442695
    %v1323 = vpow.pop %v1322
    %v1324 = vadd.f32 %v1309, 1.0
    %v1325 = vadd.f32 %v1311, 1.0
    %v1326 = vadd.f32 %v1313, 1.0
    %v1327 = vadd.f32 %v1315, 1.0
    %v1328 = vadd.f32 %v1317, 1.0
    %v1329 = vadd.f32 %v1319, 1.0
    %v1330 = vadd.f32 %v1321, 1.0
    %v1331 = vadd.f32 %v1323, 1.0
    %v1332 = vrcp.pop %v1324
    %v1333 = vmul.f32 %v1324, %v1332
    %v1334 = vsub.f32 1.0, %v1333
    %v1335 = vmul.f32 %v1332, %v1334
    %v1336 = vadd.f32 %v1332, %v1335
    %vm1337 = vweird.f32 %v1324
    %vm1338 = vweird.f32 %v1332
    %vm1339 = vmor %vm1337, %vm1338
    %v1340 = vsel %vm1339, %v1332, %v1336
    %v1341 = vand.u32 2147483647, %v1324
    %vm1342 = vcmp.eq.f32.partialorder %v1341, 8.507059e+37
    %v1343 = vand.u32 %v1324, 2147483648
    %v1344 = vor.u32 1.1754944e-38, %v1343
    %v1345 = vsel %vm1342, %v1344, %v1340
    %v1346 = vmul.f32 1.0, %v1345
    %v1347 = vrcp.pop %v1325
    %v1348 = vmul.f32 %v1325, %v1347
    %v1349 = vsub.f32 1.0, %v1348
    %v1350 = vmul.f32 %v1347, %v1349
    %v1351 = vadd.f32 %v1347, %v1350
    %vm1352 = vweird.f32 %v1325
    %vm1353 = vweird.f32 %v1347
    %vm1354 = vmor %vm1352, %vm1353
    %v1355 = vsel %vm1354, %v1347, %v1351
    %v1356 = vand.u32 2147483647, %v1325
    %vm1357 = vcmp.eq.f32.partialorder %v1356, 8.507059e+37
    %v1358 = vand.u32 %v1325, 2147483648
    %v1359 = vor.u32 1.1754944e-38, %v1358
    %v1360 = vsel %vm1357, %v1359, %v1355
    %v1361 = vmul.f32 1.0, %v1360
    %v1362 = vrcp.pop %v1326
    %v1363 = vmul.f32 %v1326, %v1362
    %v1364 = vsub.f32 1.0, %v1363
    %v1365 = vmul.f32 %v1362, %v1364
    %v1366 = vadd.f32 %v1362, %v1365
    %vm1367 = vweird.f32 %v1326
    %vm1368 = vweird.f32 %v1362
    %vm1369 = vmor %vm1367, %vm1368
    %v1370 = vsel %vm1369, %v1362, %v1366
    %v1371 = vand.u32 2147483647, %v1326
    %vm1372 = vcmp.eq.f32.partialorder %v1371, 8.507059e+37
    %v1373 = vand.u32 %v1326, 2147483648
    %v1374 = vor.u32 1.1754944e-38, %v1373
    %v1375 = vsel %vm1372, %v1374, %v1370
    %v1376 = vmul.f32 1.0, %v1375
    %v1377 = vrcp.pop %v1327
    %v1378 = vmul.f32 %v1327, %v1377
    %v1379 = vsub.f32 1.0, %v1378
    %v1380 = vmul.f32 %v1377, %v1379
    %v1381 = vadd.f32 %v1377, %v1380
    %vm1382 = vweird.f32 %v1327
    %vm1383 = vweird.f32 %v1377
    %vm1384 = vmor %vm1382, %vm1383
    %v1385 = vsel %vm1384, %v1377, %v1381
    %v1386 = vand.u32 2147483647, %v1327
    %vm1387 = vcmp.eq.f32.partialorder %v1386, 8.507059e+37
    %v1388 = vand.u32 %v1327, 2147483648
    %v1389 = vor.u32 1.1754944e-38, %v1388
    %v1390 = vsel %vm1387, %v1389, %v1385
    %v1391 = vmul.f32 1.0, %v1390
    %v1392 = vrcp.pop %v1328
    %v1393 = vmul.f32 %v1328, %v1392
    %v1394 = vsub.f32 1.0, %v1393
    %v1395 = vmul.f32 %v1392, %v1394
    %v1396 = vadd.f32 %v1392, %v1395
    %vm1397 = vweird.f32 %v1328
    %vm1398 = vweird.f32 %v1392
    %vm1399 = vmor %vm1397, %vm1398
    %v1400 = vsel %vm1399, %v1392, %v1396
    %v1401 = vand.u32 2147483647, %v1328
    %vm1402 = vcmp.eq.f32.partialorder %v1401, 8.507059e+37
    %v1403 = vand.u32 %v1328, 2147483648
    %v1404 = vor.u32 1.1754944e-38, %v1403
    %v1405 = vsel %vm1402, %v1404, %v1400
    %v1406 = vmul.f32 1.0, %v1405
    %v1407 = vrcp.pop %v1329
    %v1408 = vmul.f32 %v1329, %v1407
    %v1409 = vsub.f32 1.0, %v1408
    %v1410 = vmul.f32 %v1407, %v1409
    %v1411 = vadd.f32 %v1407, %v1410
    %vm1412 = vweird.f32 %v1329
    %vm1413 = vweird.f32 %v1407
    %vm1414 = vmor %vm1412, %vm1413
    %v1415 = vsel %vm1414, %v1407, %v1411
    %v1416 = vand.u32 2147483647, %v1329
    %vm1417 = vcmp.eq.f32.partialorder %v1416, 8.507059e+37
    %v1418 = vand.u32 %v1329, 2147483648
    %v1419 = vor.u32 1.1754944e-38, %v1418
    %v1420 = vsel %vm1417, %v1419, %v1415
    %v1421 = vmul.f32 1.0, %v1420
    %v1422 = vrcp.pop %v1330
    %v1423 = vmul.f32 %v1330, %v1422
    %v1424 = vsub.f32 1.0, %v1423
    %v1425 = vmul.f32 %v1422, %v1424
    %v1426 = vadd.f32 %v1422, %v1425
    %vm1427 = vweird.f32 %v1330
    %vm1428 = vweird.f32 %v1422
    %vm1429 = vmor %vm1427, %vm1428
    %v1430 = vsel %vm1429, %v1422, %v1426
    %v1431 = vand.u32 2147483647, %v1330
    %vm1432 = vcmp.eq.f32.partialorder %v1431, 8.507059e+37
    %v1433 = vand.u32 %v1330, 2147483648
    %v1434 = vor.u32 1.1754944e-38, %v1433
    %v1435 = vsel %vm1432, %v1434, %v1430
    %v1436 = vmul.f32 1.0, %v1435
    %v1437 = vrcp.pop %v1331
    %v1438 = vmul.f32 %v1331, %v1437
    %v1439 = vsub.f32 1.0, %v1438
    %v1440 = vmul.f32 %v1437, %v1439
    %v1441 = vadd.f32 %v1437, %v1440
    %vm1442 = vweird.f32 %v1331
    %vm1443 = vweird.f32 %v1437
    %vm1444 = vmor %vm1442, %vm1443
    %v1445 = vsel %vm1444, %v1437, %v1441
    %v1446 = vand.u32 2147483647, %v1331
    %vm1447 = vcmp.eq.f32.partialorder %v1446, 8.507059e+37
    %v1448 = vand.u32 %v1331, 2147483648
    %v1449 = vor.u32 1.1754944e-38, %v1448
    %v1450 = vsel %vm1447, %v1449, %v1445
    %v1451 = vmul.f32 1.0, %v1450
    %v1452 = vld [vmem:[%s3] sm:$0xff]
    %v1453 = vld [vmem:[%s3 + $0x8] sm:$0xff]
    %v1454 = vmul.f32 %v1346, %v1452
    %v1455 = vmul.f32 %v1361, %v1452
    %v1456 = vmul.f32 %v1376, %v1452
    %v1457 = vmul.f32 %v1391, %v1452
    %v1458 = vmul.f32 %v1406, %v1453
    %v1459 = vmul.f32 %v1421, %v1453
    %v1460 = vmul.f32 %v1436, %v1453
    %v1461 = vmul.f32 %v1451, %v1453
    %vm1462 = vcmask 392192
    %v1464 = vsel %vm1462, %v1454, 0
    %v1467 = vsel %vm1462, %v1455, 0
    %v1470 = vsel %vm1462, %v1456, 0
    %v1473 = vsel %vm1462, %v1457, 0
    %1475 = vmatpush.msra.mxu0 0.0
    %1476 = vmatpush.msra.mxu0 0.0
    %1477 = vmatpush.msra.mxu0 0.0
    %1478 = vmatpush.msra.mxu0 0.0
    %1479 = vmatpush.msra.mxu0 0.0
    %1480 = vmatpush.msra.mxu0 0.0
    %1481 = vmatpush.msra.mxu0 0.0
    %1482 = vmatpush.msra.mxu0 0.0
    %1483 = vmatpush.msra.mxu0 0.0
    %1484 = vmatpush.msra.mxu0 0.0
    %1485 = vmatpush.msra.mxu0 %v1154
    %1486 = vmatpush.msra.mxu0 %v1151
    %1487 = vmatpush.msra.mxu0 %v1148
    %1488 = vmatpush.msra.mxu0 %v1145
    %1489 = vmatpush.msra.mxu0 %v1142
    %1490 = vmatpush.msra.mxu0 %v1139
    %1491 = vmatmul.f32.gmra.mxu0 %v1464
    %v1492 = vpop.f32.mrf.mxu0
    %v1493 = vadd.f32 0.0, %v1492
    %1494 = vmatmul.f32.gmra.mxu0 %v1467
    %v1495 = vpop.f32.mrf.mxu0
    %v1496 = vadd.f32 0.0, %v1495
    %1497 = vmatmul.f32.gmra.mxu0 %v1470
    %v1498 = vpop.f32.mrf.mxu0
    %v1499 = vadd.f32 0.0, %v1498
    %1500 = vmatmul.f32.gmra.mxu0 %v1473
    %v1501 = vpop.f32.mrf.mxu0
    %v1502 = vadd.f32 0.0, %v1501
    %1503 = vdwg.mxu0
    %v1505 = vsel %vm1462, %v1458, 0
    %v1508 = vsel %vm1462, %v1459, 0
    %v1511 = vsel %vm1462, %v1460, 0
    %v1514 = vsel %vm1462, %v1461, 0
    %1516 = vmatpush.msra.mxu0 0.0
    %1517 = vmatpush.msra.mxu0 0.0
    %1518 = vmatpush.msra.mxu0 0.0
    %1519 = vmatpush.msra.mxu0 0.0
    %1520 = vmatpush.msra.mxu0 0.0
    %1521 = vmatpush.msra.mxu0 0.0
    %1522 = vmatpush.msra.mxu0 0.0
    %1523 = vmatpush.msra.mxu0 0.0
    %1524 = vmatpush.msra.mxu0 0.0
    %1525 = vmatpush.msra.mxu0 0.0
    %1526 = vmatpush.msra.mxu0 %v1172
    %1527 = vmatpush.msra.mxu0 %v1169
    %1528 = vmatpush.msra.mxu0 %v1166
    %1529 = vmatpush.msra.mxu0 %v1163
    %1530 = vmatpush.msra.mxu0 %v1160
    %1531 = vmatpush.msra.mxu0 %v1157
    %1532 = vmatmul.f32.gmra.mxu0 %v1505
    %v1533 = vpop.f32.mrf.mxu0
    %v1534 = vadd.f32 0.0, %v1533
    %1535 = vmatmul.f32.gmra.mxu0 %v1508
    %v1536 = vpop.f32.mrf.mxu0
    %v1537 = vadd.f32 0.0, %v1536
    %1538 = vmatmul.f32.gmra.mxu0 %v1511
    %v1539 = vpop.f32.mrf.mxu0
    %v1540 = vadd.f32 0.0, %v1539
    %1541 = vmatmul.f32.gmra.mxu0 %v1514
    %v1542 = vpop.f32.mrf.mxu0
    %v1543 = vadd.f32 0.0, %v1542
    %1544 = vdwg.mxu0
    %v1545 = vmul.f32 %v1493, %v189
    %v1546 = vmul.f32 %v1496, %v190
    %v1547 = vmul.f32 %v1499, %v191
    %v1548 = vmul.f32 %v1502, %v192
    %v1549 = vmul.f32 %v1534, %v189
    %v1550 = vmul.f32 %v1537, %v190
    %v1551 = vmul.f32 %v1540, %v191
    %v1552 = vmul.f32 %v1543, %v192
    %v1553 = vsel %vm41, %v1545, 0.0
    %v1554 = vsel %vm41, %v1546, 0.0
    %v1555 = vadd.f32 %v1553, %v1554
    %v1556 = vsel %vm41, %v1547, 0.0
    %v1557 = vadd.f32 %v1555, %v1556
    %v1558 = vsel %vm41, %v1548, 0.0
    %v1559 = vadd.f32 %v1557, %v1558
    %v1560 = vsel %vm41, %v1549, 0.0
    %v1561 = vsel %vm41, %v1550, 0.0
    %v1562 = vadd.f32 %v1560, %v1561
    %v1563 = vsel %vm41, %v1551, 0.0
    %v1564 = vadd.f32 %v1562, %v1563
    %v1565 = vsel %vm41, %v1552, 0.0
    %v1566 = vadd.f32 %v1564, %v1565
    %v1567 = vsel %vm41, %v1559, 0.0
    %1568 = vadd.xlane.f32.xlu0 %v1567
    %v1569 = vpop.xlane.xlu0 %1568
    %v1570 = vsel %vm41, %v1566, 0.0
    %1571 = vadd.xlane.f32.xlu0 %v1570
    %v1572 = vpop.xlane.xlu0 %1571
    %v1573 = vmul.f32 %v1569, %v54
    %v1574 = vmul.f32 %v1572, %v54
    %v1575 = vsub.f32 %v1559, %v1573
    %v1576 = vsub.f32 %v1566, %v1574
    %v1577 = vmul.f32 %v1575, %v1575
    %v1578 = vmul.f32 %v1576, %v1576
    %v1579 = vsel %vm41, %v1577, 0.0
    %1580 = vadd.xlane.f32.xlu0 %v1579
    %v1581 = vpop.xlane.xlu0 %1580
    %v1582 = vsel %vm41, %v1578, 0.0
    %1583 = vadd.xlane.f32.xlu0 %v1582
    %v1584 = vpop.xlane.xlu0 %1583
    %v1585 = vmul.f32 %v1581, %v54
    %v1586 = vmul.f32 %v1584, %v54
    %v1587 = vadd.f32 %v1585, 1e-05
    %v1588 = vadd.f32 %v1586, 1e-05
    %v1589 = vrsqrt.pop %v1587
    %v1590 = vmul.f32 %v1589, %v1587
    %v1591 = vmul.f32 %v1590, %v1589
    %v1592 = vmul.f32 0.5, %v1591
    %v1593 = vsub.f32 1.5, %v1592
    %v1594 = vmul.f32 %v1589, %v1593
    %vm1595 = vweird.f32 %v1587
    %vm1596 = vweird.f32 %v1589
    %vm1597 = vmor %vm1595, %vm1596
    %v1598 = vsel %vm1597, %v1589, %v1594
    %v1599 = vrsqrt.pop %v1588
    %v1600 = vmul.f32 %v1599, %v1588
    %v1601 = vmul.f32 %v1600, %v1599
    %v1602 = vmul.f32 0.5, %v1601
    %v1603 = vsub.f32 1.5, %v1602
    %v1604 = vmul.f32 %v1599, %v1603
    %vm1605 = vweird.f32 %v1588
    %vm1606 = vweird.f32 %v1599
    %vm1607 = vmor %vm1605, %vm1606
    %v1608 = vsel %vm1607, %v1599, %v1604
    %v1609 = vmul.f32 %v1575, %v1598
    %v1610 = vmul.f32 %v1576, %v1608
    %v1611 = vperm.slane %v24, 3
    %v1612 = vmul.f32 %v1609, %v1611
    %v1613 = vmul.f32 %v1610, %v1611
    %v1614 = vperm.slane %v25, 1
    %v1615 = vadd.f32 %v1612, %v1614
    %v1616 = vadd.f32 %v1613, %v1614
    %v1617 = vsel %vm1462, %v1454, 0.0
    %v1618 = vsel %vm1462, %v1455, 0.0
    %v1619 = vadd.f32 %v1617, %v1618
    %v1620 = vsel %vm1462, %v1456, 0.0
    %v1621 = vadd.f32 %v1619, %v1620
    %v1622 = vsel %vm1462, %v1457, 0.0
    %v1623 = vadd.f32 %v1621, %v1622
    %v1624 = vsel %vm1462, %v1458, 0.0
    %v1625 = vsel %vm1462, %v1459, 0.0
    %v1626 = vadd.f32 %v1624, %v1625
    %v1627 = vsel %vm1462, %v1460, 0.0
    %v1628 = vadd.f32 %v1626, %v1627
    %v1629 = vsel %vm1462, %v1461, 0.0
    %v1630 = vadd.f32 %v1628, %v1629
    %v1631 = vmul.f32 %v1623, 0.25
    %v1632 = vmul.f32 %v1630, 0.25
    %v1633 = vld [vmem:[%s4 + $0x1a0] sm:$0xff]
    %v1634 = vld [vmem:[%s4 + $0x1a8] sm:$0xff]
    %v1635 = vld [vmem:[%s4 + $0x1b0] sm:$0xff]
    %v1636 = vld [vmem:[%s4 + $0x1b8] sm:$0xff]
    %v1637 = vld [vmem:[%s4 + $0x1c0] sm:$0xff]
    %v1638 = vld [vmem:[%s4 + $0x1c8] sm:$0xff]
    %v1640 = vsel %vm1462, %v1631, 0
    %v1643 = vsel %vm1462, %v1632, 0
    %1645 = vmatpush.msra.mxu0 0.0
    %1646 = vmatpush.msra.mxu0 0.0
    %1647 = vmatpush.msra.mxu0 0.0
    %1648 = vmatpush.msra.mxu0 0.0
    %1649 = vmatpush.msra.mxu0 0.0
    %1650 = vmatpush.msra.mxu0 0.0
    %1651 = vmatpush.msra.mxu0 0.0
    %1652 = vmatpush.msra.mxu0 0.0
    %1653 = vmatpush.msra.mxu0 0.0
    %1654 = vmatpush.msra.mxu0 0.0
    %1655 = vmatpush.msra.mxu0 %v1638
    %1656 = vmatpush.msra.mxu0 %v1637
    %1657 = vmatpush.msra.mxu0 %v1636
    %1658 = vmatpush.msra.mxu0 %v1635
    %1659 = vmatpush.msra.mxu0 %v1634
    %1660 = vmatpush.msra.mxu0 %v1633
    %1661 = vmatmul.f32.gmra.mxu0 %v1640
    %v1662 = vpop.f32.mrf.mxu0
    %v1663 = vadd.f32 0.0, %v1662
    %1664 = vmatmul.f32.gmra.mxu0 %v1643
    %v1665 = vpop.f32.mrf.mxu0
    %v1666 = vadd.f32 0.0, %v1665
    %1667 = vdwg.mxu0
    %1670 = vrot.lane.b32.xlu0 %v1615, 32
    %v1671 = vpop.permute.xlu0 %1670
    %1672 = vrot.lane.b32.xlu0 %v1616, 32
    %v1673 = vpop.permute.xlu0 %1672
    %v1676 = vsel %vm41, %v634, %v1671
    %v1677 = vsel %vm41, %v635, %v1673
    %v1678 = vld [vmem:[%s4 + $0xe0] sm:$0xff]
    %v1679 = vld [vmem:[%s4 + $0xe8] sm:$0xff]
    %v1680 = vld [vmem:[%s4 + $0xf0] sm:$0xff]
    %v1681 = vld [vmem:[%s4 + $0xf8] sm:$0xff]
    %v1682 = vld [vmem:[%s4 + $0x100] sm:$0xff]
    %v1683 = vld [vmem:[%s4 + $0x108] sm:$0xff]
    %v1684 = vld [vmem:[%s4 + $0x110] sm:$0xff]
    %v1685 = vld [vmem:[%s4 + $0x118] sm:$0xff]
    %v1686 = vperm.slane %v26, 3
    %vm1687 = vcmask 523264
    %v1689 = vsel %vm1687, %v1676, 0
    %v1692 = vsel %vm1687, %v1677, 0
    %1694 = vmatpush.msra.mxu0 0.0
    %1695 = vmatpush.msra.mxu0 0.0
    %1696 = vmatpush.msra.mxu0 0.0
    %1697 = vmatpush.msra.mxu0 0.0
    %1698 = vmatpush.msra.mxu0 0.0
    %1699 = vmatpush.msra.mxu0 0.0
    %1700 = vmatpush.msra.mxu0 0.0
    %1701 = vmatpush.msra.mxu0 0.0
    %1702 = vmatpush.msra.mxu0 %v1685
    %1703 = vmatpush.msra.mxu0 %v1684
    %1704 = vmatpush.msra.mxu0 %v1683
    %1705 = vmatpush.msra.mxu0 %v1682
    %1706 = vmatpush.msra.mxu0 %v1681
    %1707 = vmatpush.msra.mxu0 %v1680
    %1708 = vmatpush.msra.mxu0 %v1679
    %1709 = vmatpush.msra.mxu0 %v1678
    %1710 = vmatmul.f32.gmra.mxu0 %v1689
    %v1711 = vpop.f32.mrf.mxu0
    %v1712 = vadd.f32 %v1686, %v1711
    %1713 = vmatmul.f32.gmra.mxu0 %v1692
    %v1714 = vpop.f32.mrf.mxu0
    %v1715 = vadd.f32 %v1686, %v1714
    %1716 = vdwg.mxu0
    %v1717 = vmax.f32 %v1712, 0.0
    %v1718 = vmax.f32 %v1715, 0.0
    %v1719 = vperm.slane %v27, 2
    %v1720 = vmul.f32 %v1717, %v1719
    %v1721 = vmul.f32 %v1718, %v1719
    %v1722 = vsel %vm41, %v1720, 0.0
    %1723 = vadd.xlane.f32.xlu0 %v1722
    %v1724 = vpop.xlane.xlu0 %1723
    %v1725 = vsel %vm41, %v1721, 0.0
    %1726 = vadd.xlane.f32.xlu0 %v1725
    %v1727 = vpop.xlane.xlu0 %1726
    %v1728 = vadd.f32 %v1724, 0.05
    %v1729 = vadd.f32 %v1727, 0.05
    %v1730 = vxor.u32 %v1728, 2147483648
    %v1731 = vxor.u32 %v1729, 2147483648
    %v1732 = vmul.f32 %v1730, 1.442695
    %v1733 = vpow.pop %v1732
    %v1734 = vmul.f32 %v1731, 1.442695
    %v1735 = vpow.pop %v1734
    %v1736 = vadd.f32 %v1733, 1.0
    %v1737 = vadd.f32 %v1735, 1.0
    %v1738 = vrcp.pop %v1736
    %v1739 = vmul.f32 %v1736, %v1738
    %v1740 = vsub.f32 1.0, %v1739
    %v1741 = vmul.f32 %v1738, %v1740
    %v1742 = vadd.f32 %v1738, %v1741
    %vm1743 = vweird.f32 %v1736
    %vm1744 = vweird.f32 %v1738
    %vm1745 = vmor %vm1743, %vm1744
    %v1746 = vsel %vm1745, %v1738, %v1742
    %v1747 = vand.u32 2147483647, %v1736
    %vm1748 = vcmp.eq.f32.partialorder %v1747, 8.507059e+37
    %v1749 = vand.u32 %v1736, 2147483648
    %v1750 = vor.u32 1.1754944e-38, %v1749
    %v1751 = vsel %vm1748, %v1750, %v1746
    %v1752 = vmul.f32 1.0, %v1751
    %v1753 = vrcp.pop %v1737
    %v1754 = vmul.f32 %v1737, %v1753
    %v1755 = vsub.f32 1.0, %v1754
    %v1756 = vmul.f32 %v1753, %v1755
    %v1757 = vadd.f32 %v1753, %v1756
    %vm1758 = vweird.f32 %v1737
    %vm1759 = vweird.f32 %v1753
    %vm1760 = vmor %vm1758, %vm1759
    %v1761 = vsel %vm1760, %v1753, %v1757
    %v1762 = vand.u32 2147483647, %v1737
    %vm1763 = vcmp.eq.f32.partialorder %v1762, 8.507059e+37
    %v1764 = vand.u32 %v1737, 2147483648
    %v1765 = vor.u32 1.1754944e-38, %v1764
    %v1766 = vsel %vm1763, %v1765, %v1761
    %v1767 = vmul.f32 1.0, %v1766
    %v1768 = vsub.f32 1.0, %v1752
    %v1769 = vsub.f32 1.0, %v1767
    %v1770 = vmul.f32 %v1768, %v634
    %v1771 = vmul.f32 %v1769, %v635
    %v1772 = vmul.f32 %v1752, %v1615
    %v1773 = vmul.f32 %v1767, %v1616
    %v1774 = vadd.f32 %v1770, %v1772
    %v1775 = vadd.f32 %v1771, %v1773
    %v1776 = vsel %vm41, %v1774, 0.0
    %1777 = vadd.xlane.f32.xlu0 %v1776
    %v1778 = vpop.xlane.xlu0 %1777
    %v1779 = vsel %vm41, %v1775, 0.0
    %1780 = vadd.xlane.f32.xlu0 %v1779
    %v1781 = vpop.xlane.xlu0 %1780
    %v1782 = vmul.f32 %v1778, %v54
    %v1783 = vmul.f32 %v1781, %v54
    %v1784 = vsub.f32 %v1774, %v1782
    %v1785 = vsub.f32 %v1775, %v1783
    %v1786 = vmul.f32 %v1784, %v1784
    %v1787 = vmul.f32 %v1785, %v1785
    %v1788 = vsel %vm41, %v1786, 0.0
    %1789 = vadd.xlane.f32.xlu0 %v1788
    %v1790 = vpop.xlane.xlu0 %1789
    %v1791 = vsel %vm41, %v1787, 0.0
    %1792 = vadd.xlane.f32.xlu0 %v1791
    %v1793 = vpop.xlane.xlu0 %1792
    %v1794 = vmul.f32 %v1790, %v54
    %v1795 = vmul.f32 %v1793, %v54
    %v1796 = vadd.f32 %v1794, 1e-05
    %v1797 = vadd.f32 %v1795, 1e-05
    %v1798 = vrsqrt.pop %v1796
    %v1799 = vmul.f32 %v1798, %v1796
    %v1800 = vmul.f32 %v1799, %v1798
    %v1801 = vmul.f32 0.5, %v1800
    %v1802 = vsub.f32 1.5, %v1801
    %v1803 = vmul.f32 %v1798, %v1802
    %vm1804 = vweird.f32 %v1796
    %vm1805 = vweird.f32 %v1798
    %vm1806 = vmor %vm1804, %vm1805
    %v1807 = vsel %vm1806, %v1798, %v1803
    %v1808 = vrsqrt.pop %v1797
    %v1809 = vmul.f32 %v1808, %v1797
    %v1810 = vmul.f32 %v1809, %v1808
    %v1811 = vmul.f32 0.5, %v1810
    %v1812 = vsub.f32 1.5, %v1811
    %v1813 = vmul.f32 %v1808, %v1812
    %vm1814 = vweird.f32 %v1797
    %vm1815 = vweird.f32 %v1808
    %vm1816 = vmor %vm1814, %vm1815
    %v1817 = vsel %vm1816, %v1808, %v1813
    %v1818 = vmul.f32 %v1784, %v1807
    %v1819 = vmul.f32 %v1785, %v1817
    %v1820 = vperm.slane %v24, 4
    %v1821 = vmul.f32 %v1818, %v1820
    %v1822 = vmul.f32 %v1819, %v1820
    %v1823 = vperm.slane %v25, 2
    %v1824 = vadd.f32 %v1821, %v1823
    %v1825 = vadd.f32 %v1822, %v1823
    %v1826 = vsel %vm41, %v1824, 0.0
    %1827 = vadd.xlane.f32.xlu0 %v1826
    %v1828 = vpop.xlane.xlu0 %1827
    %v1829 = vsel %vm41, %v1825, 0.0
    %1830 = vadd.xlane.f32.xlu0 %v1829
    %v1831 = vpop.xlane.xlu0 %1830
    %v1832 = vmul.f32 %v1828, %v54
    %v1833 = vmul.f32 %v1831, %v54
    %v1834 = vsub.f32 %v1824, %v1832
    %v1835 = vsub.f32 %v1825, %v1833
    %v1836 = vmul.f32 %v1834, %v1834
    %v1837 = vmul.f32 %v1835, %v1835
    %v1838 = vsel %vm41, %v1836, 0.0
    %1839 = vadd.xlane.f32.xlu0 %v1838
    %v1840 = vpop.xlane.xlu0 %1839
    %v1841 = vsel %vm41, %v1837, 0.0
    %1842 = vadd.xlane.f32.xlu0 %v1841
    %v1843 = vpop.xlane.xlu0 %1842
    %v1844 = vmul.f32 %v1840, %v54
    %v1845 = vmul.f32 %v1843, %v54
    %v1846 = vadd.f32 %v1844, 1e-05
    %v1847 = vadd.f32 %v1845, 1e-05
    %v1848 = vrsqrt.pop %v1846
    %v1849 = vmul.f32 %v1848, %v1846
    %v1850 = vmul.f32 %v1849, %v1848
    %v1851 = vmul.f32 0.5, %v1850
    %v1852 = vsub.f32 1.5, %v1851
    %v1853 = vmul.f32 %v1848, %v1852
    %vm1854 = vweird.f32 %v1846
    %vm1855 = vweird.f32 %v1848
    %vm1856 = vmor %vm1854, %vm1855
    %v1857 = vsel %vm1856, %v1848, %v1853
    %v1858 = vrsqrt.pop %v1847
    %v1859 = vmul.f32 %v1858, %v1847
    %v1860 = vmul.f32 %v1859, %v1858
    %v1861 = vmul.f32 0.5, %v1860
    %v1862 = vsub.f32 1.5, %v1861
    %v1863 = vmul.f32 %v1858, %v1862
    %vm1864 = vweird.f32 %v1847
    %vm1865 = vweird.f32 %v1858
    %vm1866 = vmor %vm1864, %vm1865
    %v1867 = vsel %vm1866, %v1858, %v1863
    %v1868 = vmul.f32 %v1834, %v1857
    %v1869 = vmul.f32 %v1835, %v1867
    %v1870 = vperm.slane %v24, 5
    %v1871 = vmul.f32 %v1868, %v1870
    %v1872 = vmul.f32 %v1869, %v1870
    %v1873 = vperm.slane %v25, 3
    %v1874 = vadd.f32 %v1871, %v1873
    %v1875 = vadd.f32 %v1872, %v1873
    %v1876 = vld [vmem:[%s4 + $0x120] sm:$0xff]
    %v1877 = vld [vmem:[%s4 + $0x128] sm:$0xff]
    %v1878 = vld [vmem:[%s4 + $0x130] sm:$0xff]
    %v1879 = vld [vmem:[%s4 + $0x138] sm:$0xff]
    %v1880 = vld [vmem:[%s4 + $0x140] sm:$0xff]
    %v1881 = vld [vmem:[%s4 + $0x148] sm:$0xff]
    %v1882 = vld [vmem:[%s4 + $0x150] sm:$0xff]
    %v1883 = vld [vmem:[%s4 + $0x158] sm:$0xff]
    %v1884 = vperm.slane %v26, 5
    %v1886 = vsel %vm41, %v1874, 0
    %v1889 = vsel %vm41, %v1875, 0
    %v1892 = vsel %vm41, %v1876, 0
    %v1895 = vsel %vm41, %v1877, 0
    %v1898 = vsel %vm41, %v1878, 0
    %v1901 = vsel %vm41, %v1879, 0
    %v1904 = vsel %vm41, %v1880, 0
    %v1907 = vsel %vm41, %v1881, 0
    %v1910 = vsel %vm41, %v1882, 0
    %v1913 = vsel %vm41, %v1883, 0
    %1915 = vmatpush.xpose.msra.mxu0 0.0
    %1916 = vmatpush.xpose.msra.mxu0 0.0
    %1917 = vmatpush.xpose.msra.mxu0 0.0
    %1918 = vmatpush.xpose.msra.mxu0 0.0
    %1919 = vmatpush.xpose.msra.mxu0 0.0
    %1920 = vmatpush.xpose.msra.mxu0 0.0
    %1921 = vmatpush.xpose.msra.mxu0 0.0
    %1922 = vmatpush.xpose.msra.mxu0 0.0
    %1923 = vmatpush.xpose.msra.mxu0 %v1913
    %1924 = vmatpush.xpose.msra.mxu0 %v1910
    %1925 = vmatpush.xpose.msra.mxu0 %v1907
    %1926 = vmatpush.xpose.msra.mxu0 %v1904
    %1927 = vmatpush.xpose.msra.mxu0 %v1901
    %1928 = vmatpush.xpose.msra.mxu0 %v1898
    %1929 = vmatpush.xpose.msra.mxu0 %v1895
    %1930 = vmatpush.xpose.msra.mxu0 %v1892
    %1931 = vmatmul.f32.gmra.mxu0 %v1886
    %v1932 = vpop.f32.mrf.mxu0
    %v1933 = vadd.f32 %v1884, %v1932
    %1934 = vmatmul.f32.gmra.mxu0 %v1889
    %v1935 = vpop.f32.mrf.mxu0
    %v1936 = vadd.f32 %v1884, %v1935
    %1937 = vdwg.mxu0
    %v1938 = vmax.f32 %v1933, 0.0
    %v1939 = vmax.f32 %v1936, 0.0
    %v1940 = vld [vmem:[%s4 + $0x160] sm:$0xff]
    %v1941 = vld [vmem:[%s4 + $0x168] sm:$0xff]
    %v1942 = vld [vmem:[%s4 + $0x170] sm:$0xff]
    %v1943 = vld [vmem:[%s4 + $0x178] sm:$0xff]
    %v1944 = vld [vmem:[%s4 + $0x180] sm:$0xff]
    %v1945 = vld [vmem:[%s4 + $0x188] sm:$0xff]
    %v1946 = vld [vmem:[%s4 + $0x190] sm:$0xff]
    %v1947 = vld [vmem:[%s4 + $0x198] sm:$0xff]
    %v1948 = vperm.slane %v26, 4
    %v1950 = vsel %vm1687, %v1938, 0
    %v1953 = vsel %vm1687, %v1939, 0
    %1955 = vmatpush.msra.mxu0 0.0
    %1956 = vmatpush.msra.mxu0 0.0
    %1957 = vmatpush.msra.mxu0 0.0
    %1958 = vmatpush.msra.mxu0 0.0
    %1959 = vmatpush.msra.mxu0 0.0
    %1960 = vmatpush.msra.mxu0 0.0
    %1961 = vmatpush.msra.mxu0 0.0
    %1962 = vmatpush.msra.mxu0 0.0
    %1963 = vmatpush.msra.mxu0 %v1947
    %1964 = vmatpush.msra.mxu0 %v1946
    %1965 = vmatpush.msra.mxu0 %v1945
    %1966 = vmatpush.msra.mxu0 %v1944
    %1967 = vmatpush.msra.mxu0 %v1943
    %1968 = vmatpush.msra.mxu0 %v1942
    %1969 = vmatpush.msra.mxu0 %v1941
    %1970 = vmatpush.msra.mxu0 %v1940
    %1971 = vmatmul.f32.gmra.mxu0 %v1950
    %v1972 = vpop.f32.mrf.mxu0
    %v1973 = vadd.f32 %v1948, %v1972
    %1974 = vmatmul.f32.gmra.mxu0 %v1953
    %v1975 = vpop.f32.mrf.mxu0
    %v1976 = vadd.f32 %v1948, %v1975
    %1977 = vdwg.mxu0
    %v1978 = vadd.f32 %v1824, %v1973
    %v1979 = vadd.f32 %v1825, %v1976
    %1982 = vrot.lane.b32.xlu0 %v1663, 32
    %v1983 = vpop.permute.xlu0 %1982
    %1984 = vrot.lane.b32.xlu0 %v1666, 32
    %v1985 = vpop.permute.xlu0 %1984
    %v1988 = vsel %vm41, %v1978, %v1983
    %v1989 = vsel %vm41, %v1979, %v1985
    %v1990 = vsel %vm1687, %v1988, %v1752
    %v1991 = vsel %vm1687, %v1989, %v1767
    %1992 = vst [vmem:[#allocation2] sm:$0xff] %v1990
    %1993 = vst [vmem:[#allocation2 + $0x8] sm:$0xff] %v1991
    // Predicated region
    $region26: #{tpu_custom_call.1} parent=1 // pred_check
      _
    $region27: #{tpu_custom_call.1} parent=1 // pred_check_branch
      %1995 = sbr.rel (0) target = $region29
    $region28: #{tpu_custom_call.1} parent=1 // pred_region
      %1997 = vsyncadd [#allocation3], 0
      %s1998 = sshll.u32 [#allocation2], 4
      %s1999 = int_to_ptr.vmem [resolvable:$true] %s1998
      %s2000 = sshll.u32 %s6, 4
      %s2001 = int_to_ptr.hbm [resolvable:$true] %s2000
      %2006 = dma.vmem_to_hbm [thread:$0]  %s1999, 256, %s2001, [#allocation3], 128, 128, 8
    $region29: #{tpu_custom_call.1} parent=1 // pred_fallthru
      _
    // Predicated region
    $region30: #{tpu_custom_call.1} parent=1 // pred_check
      _
    $region31: #{tpu_custom_call.1} parent=1 // pred_check_branch
      %2008 = sbr.rel (0) target = $region33
    $region32: #{tpu_custom_call.1} parent=1 // pred_region
      %2010 = dma.done [#allocation3], 256
    $region33: #{tpu_custom_call.1} parent=1 // pred_fallthru
      _
    %2011 = vsyncpa [#allocation3], 1

</llo_original>
